<compile_context>
chip_gen: v6e
topology: v6e:2x2x1
jax: 0.10.0
libtpu: 0.0.40
codegen_flags: <defaults>
</compile_context>

<pallas_src>
import functools

import jax
import jax.numpy as jnp
from jax.experimental import pallas as pl
from jax.experimental.pallas import tpu as pltpu


# ---------------------------------------------------------------------------
# Kernel: whole flow (all coupling layers) for one batch tile.
#   xl_ref   : (dp, TB)     rows [0:D]=x, [D:]=labels
#   mask_ref : (L, dp, 1)   per-layer mask, label rows fixed at 1.0
#   w1_ref   : (L, 2H, dp)  mask already folded into columns
#   b1_ref   : (L, 2H, 1)
#   w2_ref   : (L, 2H, 2H)  block-diagonal s/t
#   b2_ref   : (L, 2H, 1)
#   w3_ref   : (L, 2*dp, 2H)  t rows pre-scaled by (1-mask); label rows zero
#   b3_ref   : (L, 2*dp, 1)
#   y_ref    : (D, TB)      only the x rows are written back
#   ldj_ref  : (1, TB)      lane-dense log-det-jacobian
# ---------------------------------------------------------------------------
def _realnvp_kernel(xl_ref, mask_ref,
                    w1_ref, b1_ref, w2_ref, b2_ref, w3_ref, b3_ref,
                    y_ref, ldj_ref, *, n_layers, d_out, dp):
    xl = xl_ref[...]                                   # (dp, TB) f32
    ldj = jnp.zeros((1, xl.shape[1]), jnp.float32)

    for l in range(n_layers):                          # small L -> unrolled
        m = mask_ref[l]                                # (dp, 1), label rows = 1
        inv_m = 1.0 - m

        # mask is folded into w1 columns, so xl feeds the first dot directly.
        h = jnp.dot(w1_ref[l], xl, preferred_element_type=jnp.float32) + b1_ref[l]
        h = jnp.maximum(h, 0.0)                        # (2H, TB)
        h = jnp.dot(w2_ref[l], h, preferred_element_type=jnp.float32) + b2_ref[l]
        h = jnp.maximum(h, 0.0)                        # (2H, TB)
        st = jnp.dot(w3_ref[l], h, preferred_element_type=jnp.float32) + b3_ref[l]
        # st: (2*dp, TB); first dp rows -> s branch (label rows exactly 0),
        #                 last dp rows  -> (1-mask)*t branch (label rows 0).
        s = jnp.tanh(st[:dp])                          # (dp, TB)
        t = st[dp:]                                    # (dp, TB), pre-masked

        # x_new = x*mask + (1-mask)*(x*exp(s)) + (1-mask)*t ; labels unchanged.
        xl = xl * (m + inv_m * jnp.exp(s)) + t
        # s is 0 on the label rows, so summing the whole slab equals the
        # PyTorch s_out.sum(dim=1).
        ldj = ldj + jnp.sum(s, axis=0, keepdims=True)

    y_ref[...] = xl[:d_out]
    ldj_ref[...] = ldj


# ---------------------------------------------------------------------------
# Wrapper: layout plumbing + pallas_call with a batch grid.
# ---------------------------------------------------------------------------
def realnvp_forward(x, labels, masks_flat, fused, *, block_batch=512):
    """x: (B, D) f32, labels: (B, Dl) f32, masks_flat: (L, D),
    fused: dict of stacked/fused weights (see fuse_params)."""
    B, D = x.shape
    Dl = labels.shape[1]
    dp = D + Dl
    L = masks_flat.shape[0]

    # One big lane-dense tile per grid step; for small B a single block
    # covering round_up(B, 128).  (On v7x with large B, choose block_batch so
    # n_blocks >= 2 and both TensorCores get a share of the batch.)
    TB = max(128, min(block_batch, ((B + 127) // 128) * 128))
    n_blocks = pl.cdiv(B, TB)
    B_pad = n_blocks * TB

    # batch-on-lanes slab, zero-padded along the lane (batch) axis
    xl = jnp.concatenate([x.T, labels.T], axis=0).astype(jnp.float32)   # (dp, B)
    xl = jnp.pad(xl, ((0, 0), (0, B_pad - B)))

    # per-layer masks extended with 1.0 for the label rows -> (L, dp, 1)
    masks_full = jnp.concatenate(
        [masks_flat.astype(jnp.float32), jnp.ones((L, Dl), jnp.float32)], axis=1
    )[:, :, None]

    def tile_spec(rows):
        return pl.BlockSpec((rows, TB), lambda i: (0, i))

    def resident_spec(arr):                       # fetched once, constant block
        return pl.BlockSpec(arr.shape, lambda i, nd=arr.ndim: (0,) * nd)

    inputs = (xl, masks_full, fused["w1"], fused["b1"], fused["w2"],
              fused["b2"], fused["w3"], fused["b3"])

    y_slab, ldj = pl.pallas_call(
        functools.partial(_realnvp_kernel, n_layers=L, d_out=D, dp=dp),
        grid_spec=pltpu.PrefetchScalarGridSpec(
            num_scalar_prefetch=0,
            grid=(n_blocks,),
            in_specs=[tile_spec(dp)] + [resident_spec(a) for a in inputs[1:]],
            out_specs=(tile_spec(D), tile_spec(1)),
        ),
        out_shape=(
            jax.ShapeDtypeStruct((D, B_pad), jnp.float32),
            jax.ShapeDtypeStruct((1, B_pad), jnp.float32),
        ),
        compiler_params=pltpu.CompilerParams(
            dimension_semantics=("parallel",),
        ),
    )(*inputs)

    y = y_slab[:, :B].T           # back to (B, D)
    ldj = ldj[0, :B]              # (B,)
    return y, ldj


# ---------------------------------------------------------------------------
# Parameter construction (mimics nn.Linear default U(-k, k) init, torch layout)
# ---------------------------------------------------------------------------
def _init_linear(key, fan_in, fan_out):
    bound = 1.0 / (fan_in ** 0.5)
    kw, kb = jax.random.split(key)
    w = jax.random.uniform(kw, (fan_out, fan_in), jnp.float32, -bound, bound)
    b = jax.random.uniform(kb, (fan_out,), jnp.float32, -bound, bound)
    return w, b


def init_coupling_params(key, input_dim, output_dim, hid_dim, n_layers):
    """Per-layer s/t Linear weights in torch (out, in) layout."""
    layers = []
    lkeys = jax.random.split(key, n_layers)
    for l in range(n_layers):
        ks = jax.random.split(lkeys[l], 6)
        layers.append({
            "s1": _init_linear(ks[0], input_dim, hid_dim),
            "s2": _init_linear(ks[1], hid_dim, hid_dim),
            "s3": _init_linear(ks[2], hid_dim, output_dim),
            "t1": _init_linear(ks[3], input_dim, hid_dim),
            "t2": _init_linear(ks[4], hid_dim, hid_dim),
            "t3": _init_linear(ks[5], hid_dim, output_dim),
        })
    return layers


def fuse_params(layers, masks_flat, output_dim, label_dim, hid_dim):
    """Fuse s/t subnets per layer into single MXU operands (transposed layout).

    Also folds the per-layer input mask into w1's columns and (1 - mask) into
    the t-branch rows of w3/b3, removing two (dp, TB) VPU multiplies per layer
    from the kernel at zero runtime cost."""
    D, Dl, H = output_dim, label_dim, hid_dim
    dp = D + Dl
    w1s, b1s, w2s, b2s, w3s, b3s = [], [], [], [], [], []
    for l, p in enumerate(layers):
        (ws1, bs1), (ws2, bs2), (ws3, bs3) = p["s1"], p["s2"], p["s3"]
        (wt1, bt1), (wt2, bt2), (wt3, bt3) = p["t1"], p["t2"], p["t3"]

        m = masks_flat[l].astype(jnp.float32)                         # (D,)
        col_mask = jnp.concatenate([m, jnp.ones((Dl,), jnp.float32)]) # (dp,)
        inv_m = 1.0 - m                                               # (D,)

        # layer 1: stack s/t and fold the input mask into the columns.
        w1f = jnp.concatenate([ws1, wt1], axis=0) * col_mask[None, :] # (2H, dp)
        w1s.append(w1f)
        b1s.append(jnp.concatenate([bs1, bt1])[:, None])              # (2H, 1)

        # layer 2: block-diagonal (fine while 2H fits one MXU tile; split back
        # into two (H, H) dots if hid_dim grows past that).
        w2f = jnp.zeros((2 * H, 2 * H), jnp.float32)
        w2f = w2f.at[:H, :H].set(ws2).at[H:, H:].set(wt2)
        w2s.append(w2f)
        b2s.append(jnp.concatenate([bs2, bt2])[:, None])

        # layer 3: s rows unmasked (ldj needs full tanh(s)); t rows pre-scaled
        # by (1 - mask); label-slot rows stay zero so labels pass through.
        w3f = jnp.zeros((2 * dp, 2 * H), jnp.float32)
        w3f = w3f.at[:D, :H].set(ws3).at[dp:dp + D, H:].set(wt3 * inv_m[:, None])
        w3s.append(w3f)
        b3f = jnp.zeros((2 * dp, 1), jnp.float32)
        b3f = b3f.at[:D, 0].set(bs3).at[dp:dp + D, 0].set(bt3 * inv_m)
        b3s.append(b3f)

    stack = lambda xs: jnp.stack(xs, axis=0)
    return {"w1": stack(w1s), "b1": stack(b1s), "w2": stack(w2s),
            "b2": stack(b2s), "w3": stack(w3s), "b3": stack(b3s)}


def build_masks(base_mask, n_layers):
    """Replicates ConditionalRealNVP.__init__ mask alternation exactly."""
    masks = [base_mask]
    m = base_mask
    for _ in range(n_layers - 2):
        m = 1 - m
        masks.append(m)
    masks.append(1 - m)
    return jnp.stack(masks, axis=0)                 # (L, D)


# ---------------------------------------------------------------------------
# Pure-JAX reference (mirrors the PyTorch forward, un-fused weights).
# ---------------------------------------------------------------------------
def realnvp_reference(x, labels, masks_flat, layers):
    ldj_sum = jnp.zeros((x.shape[0],), jnp.float32)
    for l, p in enumerate(layers):
        m = masks_flat[l]                           # (D,)
        x_mask = x * m
        xm = jnp.concatenate([x_mask, labels], axis=1)

        def mlp(w1, b1, w2, b2, w3, b3):
            h = jnp.maximum(xm @ w1.T + b1, 0.0)
            h = jnp.maximum(h @ w2.T + b2, 0.0)
            return h @ w3.T + b3

        s_out = jnp.tanh(mlp(*p["s1"], *p["s2"], *p["s3"]))
        t_out = mlp(*p["t1"], *p["t2"], *p["t3"])
        x = x_mask + (1.0 - m) * (x * jnp.exp(s_out) + t_out)
        ldj_sum = ldj_sum + jnp.sum(s_out, axis=1)
    return x, ldj_sum


if __name__ == "__main__":
    # Small shapes consistent with the module:
    #   x: (batch, output_dim), labels: (batch, label_dim),
    #   input_dim = output_dim + label_dim (torch.cat([x_mask, labels], dim=1)).
    batch = 200                      # exercises lane padding (B_pad = 256)
    output_dim = 4
    label_dim = 4
    input_dim = output_dim + label_dim
    hid_dim = 32
    n_layers = 4

    key = jax.random.PRNGKey(0)
    kx, klab, kp = jax.random.split(key, 3)

    x = jax.random.normal(kx, (batch, output_dim), jnp.float32)
    labels = jax.random.normal(klab, (batch, label_dim), jnp.float32)

    base_mask = jnp.array([1.0, 0.0, 1.0, 0.0], jnp.float32)  # checkerboard
    masks_flat = build_masks(base_mask, n_layers)             # (L, D)

    layers = init_coupling_params(kp, input_dim, output_dim, hid_dim, n_layers)
    fused = fuse_params(layers, masks_flat, output_dim, label_dim, hid_dim)

    y, ldj = realnvp_forward(x, labels, masks_flat, fused, block_batch=512)
    jax.block_until_ready((y, ldj))

    y_ref, ldj_ref = realnvp_reference(x, labels, masks_flat, layers)
    assert y.shape == (batch, output_dim) and ldj.shape == (batch,)
    assert jnp.allclose(y, y_ref, rtol=1e-3, atol=1e-3), \
        float(jnp.max(jnp.abs(y - y_ref)))
    assert jnp.allclose(ldj, ldj_ref, rtol=1e-3, atol=1e-3), \
        float(jnp.max(jnp.abs(ldj - ldj_ref)))

    print("KERNEL_OK")
</pallas_src>

<mosaic_0001>
module attributes {stable_mosaic.version = 11 : i64} {
  func.func @_realnvp_kernel(%arg0: i32, %arg1: memref<8x256xf32, #tpu.memory_space<vmem>>, %arg2: memref<4x8x1xf32, #tpu.memory_space<vmem>>, %arg3: memref<4x64x8xf32, #tpu.memory_space<vmem>>, %arg4: memref<4x64x1xf32, #tpu.memory_space<vmem>>, %arg5: memref<4x64x64xf32, #tpu.memory_space<vmem>>, %arg6: memref<4x64x1xf32, #tpu.memory_space<vmem>>, %arg7: memref<4x16x64xf32, #tpu.memory_space<vmem>>, %arg8: memref<4x16x1xf32, #tpu.memory_space<vmem>>, %arg9: memref<4x256xf32, #tpu.memory_space<vmem>>, %arg10: memref<1x256xf32, #tpu.memory_space<vmem>>) attributes {dimension_semantics = [#tpu.dimension_semantics<parallel>], iteration_bounds = array<i64: 1>, scalar_prefetch = 0 : i64, scratch_operands = 0 : i64, tpu.core_type = #tpu.core_type<tc>, window_params = [{transform_indices = @transform_0, window_bounds = array<i64: 8, 256>}, {pipeline_mode = #tpu.pipeline_mode<synchronous>, transform_indices = @transform_1, window_bounds = array<i64: 4, 8, 1>}, {pipeline_mode = #tpu.pipeline_mode<synchronous>, transform_indices = @transform_2, window_bounds = array<i64: 4, 64, 8>}, {pipeline_mode = #tpu.pipeline_mode<synchronous>, transform_indices = @transform_3, window_bounds = array<i64: 4, 64, 1>}, {pipeline_mode = #tpu.pipeline_mode<synchronous>, transform_indices = @transform_4, window_bounds = array<i64: 4, 64, 64>}, {pipeline_mode = #tpu.pipeline_mode<synchronous>, transform_indices = @transform_5, window_bounds = array<i64: 4, 64, 1>}, {pipeline_mode = #tpu.pipeline_mode<synchronous>, transform_indices = @transform_6, window_bounds = array<i64: 4, 16, 64>}, {pipeline_mode = #tpu.pipeline_mode<synchronous>, transform_indices = @transform_7, window_bounds = array<i64: 4, 16, 1>}, {transform_indices = @transform_8, window_bounds = array<i64: 4, 256>}, {transform_indices = @transform_9, window_bounds = array<i64: 1, 256>}]} {
    %c0 = arith.constant 0 : index
    %c0_0 = arith.constant 0 : index
    %0 = vector.load %arg1[%c0, %c0_0] : memref<8x256xf32, #tpu.memory_space<vmem>>, vector<8x256xf32>
    %cst = arith.constant 0.000000e+00 : f32
    %1 = vector.broadcast %cst : f32 to vector<1x256xf32>
    %c0_1 = arith.constant 0 : index
    %c0_2 = arith.constant 0 : index
    %c0_3 = arith.constant 0 : index
    %2 = vector.load %arg2[%c0_1, %c0_2, %c0_3] : memref<4x8x1xf32, #tpu.memory_space<vmem>>, vector<1x8x1xf32>
    %3 = vector.shape_cast %2 : vector<1x8x1xf32> to vector<8x1xf32>
    %cst_4 = arith.constant 1.000000e+00 : f32
    %4 = vector.broadcast %cst_4 : f32 to vector<8x1xf32>
    %5 = arith.subf %4, %3 : vector<8x1xf32>
    %c0_5 = arith.constant 0 : index
    %c0_6 = arith.constant 0 : index
    %c0_7 = arith.constant 0 : index
    %6 = vector.load %arg3[%c0_5, %c0_6, %c0_7] : memref<4x64x8xf32, #tpu.memory_space<vmem>>, vector<1x64x8xf32>
    %7 = vector.shape_cast %6 : vector<1x64x8xf32> to vector<64x8xf32>
    %cst_8 = arith.constant dense<0.000000e+00> : vector<64x256xf32>
    %8 = tpu.matmul %7, %0, %cst_8 {dimension_numbers = #tpu.dot_dimension_numbers<[1], [0], [0], [1], [0, 0, 1, 1], [], []>} : vector<64x8xf32>, vector<8x256xf32>, vector<64x256xf32> -> vector<64x256xf32>
    %c0_9 = arith.constant 0 : index
    %c0_10 = arith.constant 0 : index
    %c0_11 = arith.constant 0 : index
    %9 = vector.load %arg4[%c0_9, %c0_10, %c0_11] : memref<4x64x1xf32, #tpu.memory_space<vmem>>, vector<1x64x1xf32>
    %10 = vector.shape_cast %9 : vector<1x64x1xf32> to vector<64x1xf32>
    %11 = vector.broadcast %10 : vector<64x1xf32> to vector<64x256xf32>
    %12 = arith.addf %8, %11 : vector<64x256xf32>
    %cst_12 = arith.constant 0.000000e+00 : f32
    %13 = vector.broadcast %cst_12 : f32 to vector<64x256xf32>
    %14 = arith.maximumf %12, %13 : vector<64x256xf32>
    %c0_13 = arith.constant 0 : index
    %c0_14 = arith.constant 0 : index
    %c0_15 = arith.constant 0 : index
    %15 = vector.load %arg5[%c0_13, %c0_14, %c0_15] : memref<4x64x64xf32, #tpu.memory_space<vmem>>, vector<1x64x64xf32>
    %16 = vector.shape_cast %15 : vector<1x64x64xf32> to vector<64x64xf32>
    %cst_16 = arith.constant dense<0.000000e+00> : vector<64x256xf32>
    %17 = tpu.matmul %16, %14, %cst_16 {dimension_numbers = #tpu.dot_dimension_numbers<[1], [0], [0], [1], [0, 0, 1, 1], [], []>} : vector<64x64xf32>, vector<64x256xf32>, vector<64x256xf32> -> vector<64x256xf32>
    %c0_17 = arith.constant 0 : index
    %c0_18 = arith.constant 0 : index
    %c0_19 = arith.constant 0 : index
    %18 = vector.load %arg6[%c0_17, %c0_18, %c0_19] : memref<4x64x1xf32, #tpu.memory_space<vmem>>, vector<1x64x1xf32>
    %19 = vector.shape_cast %18 : vector<1x64x1xf32> to vector<64x1xf32>
    %20 = vector.broadcast %19 : vector<64x1xf32> to vector<64x256xf32>
    %21 = arith.addf %17, %20 : vector<64x256xf32>
    %cst_20 = arith.constant 0.000000e+00 : f32
    %22 = vector.broadcast %cst_20 : f32 to vector<64x256xf32>
    %23 = arith.maximumf %21, %22 : vector<64x256xf32>
    %c0_21 = arith.constant 0 : index
    %c0_22 = arith.constant 0 : index
    %c0_23 = arith.constant 0 : index
    %24 = vector.load %arg7[%c0_21, %c0_22, %c0_23] : memref<4x16x64xf32, #tpu.memory_space<vmem>>, vector<1x16x64xf32>
    %25 = vector.shape_cast %24 : vector<1x16x64xf32> to vector<16x64xf32>
    %cst_24 = arith.constant dense<0.000000e+00> : vector<16x256xf32>
    %26 = tpu.matmul %25, %23, %cst_24 {dimension_numbers = #tpu.dot_dimension_numbers<[1], [0], [0], [1], [0, 0, 1, 1], [], []>} : vector<16x64xf32>, vector<64x256xf32>, vector<16x256xf32> -> vector<16x256xf32>
    %c0_25 = arith.constant 0 : index
    %c0_26 = arith.constant 0 : index
    %c0_27 = arith.constant 0 : index
    %27 = vector.load %arg8[%c0_25, %c0_26, %c0_27] : memref<4x16x1xf32, #tpu.memory_space<vmem>>, vector<1x16x1xf32>
    %28 = vector.shape_cast %27 : vector<1x16x1xf32> to vector<16x1xf32>
    %29 = vector.broadcast %28 : vector<16x1xf32> to vector<16x256xf32>
    %30 = arith.addf %26, %29 : vector<16x256xf32>
    %31 = vector.extract_strided_slice %30 {offsets = [0, 0], sizes = [8, 256], strides = [1, 1]} : vector<16x256xf32> to vector<8x256xf32>
    %32 = math.tanh %31 : vector<8x256xf32>
    %33 = vector.extract_strided_slice %30 {offsets = [8, 0], sizes = [8, 256], strides = [1, 1]} : vector<16x256xf32> to vector<8x256xf32>
    %34 = math.exp %32 : vector<8x256xf32>
    %35 = vector.broadcast %5 : vector<8x1xf32> to vector<8x256xf32>
    %36 = arith.mulf %35, %34 : vector<8x256xf32>
    %37 = vector.broadcast %3 : vector<8x1xf32> to vector<8x256xf32>
    %38 = arith.addf %37, %36 : vector<8x256xf32>
    %39 = arith.mulf %0, %38 : vector<8x256xf32>
    %40 = arith.addf %39, %33 : vector<8x256xf32>
    %cst_28 = arith.constant dense<0.000000e+00> : vector<256xf32>
    %41 = vector.multi_reduction <add>, %32, %cst_28 [0] : vector<8x256xf32> to vector<256xf32>
    %42 = vector.shape_cast %41 : vector<256xf32> to vector<1x256xf32>
    %43 = arith.addf %1, %42 : vector<1x256xf32>
    %c1 = arith.constant 1 : index
    %c0_29 = arith.constant 0 : index
    %c0_30 = arith.constant 0 : index
    %44 = vector.load %arg2[%c1, %c0_29, %c0_30] : memref<4x8x1xf32, #tpu.memory_space<vmem>>, vector<1x8x1xf32>
    %45 = vector.shape_cast %44 : vector<1x8x1xf32> to vector<8x1xf32>
    %cst_31 = arith.constant 1.000000e+00 : f32
    %46 = vector.broadcast %cst_31 : f32 to vector<8x1xf32>
    %47 = arith.subf %46, %45 : vector<8x1xf32>
    %c1_32 = arith.constant 1 : index
    %c0_33 = arith.constant 0 : index
    %c0_34 = arith.constant 0 : index
    %48 = vector.load %arg3[%c1_32, %c0_33, %c0_34] : memref<4x64x8xf32, #tpu.memory_space<vmem>>, vector<1x64x8xf32>
    %49 = vector.shape_cast %48 : vector<1x64x8xf32> to vector<64x8xf32>
    %cst_35 = arith.constant dense<0.000000e+00> : vector<64x256xf32>
    %50 = tpu.matmul %49, %40, %cst_35 {dimension_numbers = #tpu.dot_dimension_numbers<[1], [0], [0], [1], [0, 0, 1, 1], [], []>} : vector<64x8xf32>, vector<8x256xf32>, vector<64x256xf32> -> vector<64x256xf32>
    %c1_36 = arith.constant 1 : index
    %c0_37 = arith.constant 0 : index
    %c0_38 = arith.constant 0 : index
    %51 = vector.load %arg4[%c1_36, %c0_37, %c0_38] : memref<4x64x1xf32, #tpu.memory_space<vmem>>, vector<1x64x1xf32>
    %52 = vector.shape_cast %51 : vector<1x64x1xf32> to vector<64x1xf32>
    %53 = vector.broadcast %52 : vector<64x1xf32> to vector<64x256xf32>
    %54 = arith.addf %50, %53 : vector<64x256xf32>
    %cst_39 = arith.constant 0.000000e+00 : f32
    %55 = vector.broadcast %cst_39 : f32 to vector<64x256xf32>
    %56 = arith.maximumf %54, %55 : vector<64x256xf32>
    %c1_40 = arith.constant 1 : index
    %c0_41 = arith.constant 0 : index
    %c0_42 = arith.constant 0 : index
    %57 = vector.load %arg5[%c1_40, %c0_41, %c0_42] : memref<4x64x64xf32, #tpu.memory_space<vmem>>, vector<1x64x64xf32>
    %58 = vector.shape_cast %57 : vector<1x64x64xf32> to vector<64x64xf32>
    %cst_43 = arith.constant dense<0.000000e+00> : vector<64x256xf32>
    %59 = tpu.matmul %58, %56, %cst_43 {dimension_numbers = #tpu.dot_dimension_numbers<[1], [0], [0], [1], [0, 0, 1, 1], [], []>} : vector<64x64xf32>, vector<64x256xf32>, vector<64x256xf32> -> vector<64x256xf32>
    %c1_44 = arith.constant 1 : index
    %c0_45 = arith.constant 0 : index
    %c0_46 = arith.constant 0 : index
    %60 = vector.load %arg6[%c1_44, %c0_45, %c0_46] : memref<4x64x1xf32, #tpu.memory_space<vmem>>, vector<1x64x1xf32>
    %61 = vector.shape_cast %60 : vector<1x64x1xf32> to vector<64x1xf32>
    %62 = vector.broadcast %61 : vector<64x1xf32> to vector<64x256xf32>
    %63 = arith.addf %59, %62 : vector<64x256xf32>
    %cst_47 = arith.constant 0.000000e+00 : f32
    %64 = vector.broadcast %cst_47 : f32 to vector<64x256xf32>
    %65 = arith.maximumf %63, %64 : vector<64x256xf32>
    %c1_48 = arith.constant 1 : index
    %c0_49 = arith.constant 0 : index
    %c0_50 = arith.constant 0 : index
    %66 = vector.load %arg7[%c1_48, %c0_49, %c0_50] : memref<4x16x64xf32, #tpu.memory_space<vmem>>, vector<1x16x64xf32>
    %67 = vector.shape_cast %66 : vector<1x16x64xf32> to vector<16x64xf32>
    %cst_51 = arith.constant dense<0.000000e+00> : vector<16x256xf32>
    %68 = tpu.matmul %67, %65, %cst_51 {dimension_numbers = #tpu.dot_dimension_numbers<[1], [0], [0], [1], [0, 0, 1, 1], [], []>} : vector<16x64xf32>, vector<64x256xf32>, vector<16x256xf32> -> vector<16x256xf32>
    %c1_52 = arith.constant 1 : index
    %c0_53 = arith.constant 0 : index
    %c0_54 = arith.constant 0 : index
    %69 = vector.load %arg8[%c1_52, %c0_53, %c0_54] : memref<4x16x1xf32, #tpu.memory_space<vmem>>, vector<1x16x1xf32>
    %70 = vector.shape_cast %69 : vector<1x16x1xf32> to vector<16x1xf32>
    %71 = vector.broadcast %70 : vector<16x1xf32> to vector<16x256xf32>
    %72 = arith.addf %68, %71 : vector<16x256xf32>
    %73 = vector.extract_strided_slice %72 {offsets = [0, 0], sizes = [8, 256], strides = [1, 1]} : vector<16x256xf32> to vector<8x256xf32>
    %74 = math.tanh %73 : vector<8x256xf32>
    %75 = vector.extract_strided_slice %72 {offsets = [8, 0], sizes = [8, 256], strides = [1, 1]} : vector<16x256xf32> to vector<8x256xf32>
    %76 = math.exp %74 : vector<8x256xf32>
    %77 = vector.broadcast %47 : vector<8x1xf32> to vector<8x256xf32>
    %78 = arith.mulf %77, %76 : vector<8x256xf32>
    %79 = vector.broadcast %45 : vector<8x1xf32> to vector<8x256xf32>
    %80 = arith.addf %79, %78 : vector<8x256xf32>
    %81 = arith.mulf %40, %80 : vector<8x256xf32>
    %82 = arith.addf %81, %75 : vector<8x256xf32>
    %cst_55 = arith.constant dense<0.000000e+00> : vector<256xf32>
    %83 = vector.multi_reduction <add>, %74, %cst_55 [0] : vector<8x256xf32> to vector<256xf32>
    %84 = vector.shape_cast %83 : vector<256xf32> to vector<1x256xf32>
    %85 = arith.addf %43, %84 : vector<1x256xf32>
    %c2 = arith.constant 2 : index
    %c0_56 = arith.constant 0 : index
    %c0_57 = arith.constant 0 : index
    %86 = vector.load %arg2[%c2, %c0_56, %c0_57] : memref<4x8x1xf32, #tpu.memory_space<vmem>>, vector<1x8x1xf32>
    %87 = vector.shape_cast %86 : vector<1x8x1xf32> to vector<8x1xf32>
    %cst_58 = arith.constant 1.000000e+00 : f32
    %88 = vector.broadcast %cst_58 : f32 to vector<8x1xf32>
    %89 = arith.subf %88, %87 : vector<8x1xf32>
    %c2_59 = arith.constant 2 : index
    %c0_60 = arith.constant 0 : index
    %c0_61 = arith.constant 0 : index
    %90 = vector.load %arg3[%c2_59, %c0_60, %c0_61] : memref<4x64x8xf32, #tpu.memory_space<vmem>>, vector<1x64x8xf32>
    %91 = vector.shape_cast %90 : vector<1x64x8xf32> to vector<64x8xf32>
    %cst_62 = arith.constant dense<0.000000e+00> : vector<64x256xf32>
    %92 = tpu.matmul %91, %82, %cst_62 {dimension_numbers = #tpu.dot_dimension_numbers<[1], [0], [0], [1], [0, 0, 1, 1], [], []>} : vector<64x8xf32>, vector<8x256xf32>, vector<64x256xf32> -> vector<64x256xf32>
    %c2_63 = arith.constant 2 : index
    %c0_64 = arith.constant 0 : index
    %c0_65 = arith.constant 0 : index
    %93 = vector.load %arg4[%c2_63, %c0_64, %c0_65] : memref<4x64x1xf32, #tpu.memory_space<vmem>>, vector<1x64x1xf32>
    %94 = vector.shape_cast %93 : vector<1x64x1xf32> to vector<64x1xf32>
    %95 = vector.broadcast %94 : vector<64x1xf32> to vector<64x256xf32>
    %96 = arith.addf %92, %95 : vector<64x256xf32>
    %cst_66 = arith.constant 0.000000e+00 : f32
    %97 = vector.broadcast %cst_66 : f32 to vector<64x256xf32>
    %98 = arith.maximumf %96, %97 : vector<64x256xf32>
    %c2_67 = arith.constant 2 : index
    %c0_68 = arith.constant 0 : index
    %c0_69 = arith.constant 0 : index
    %99 = vector.load %arg5[%c2_67, %c0_68, %c0_69] : memref<4x64x64xf32, #tpu.memory_space<vmem>>, vector<1x64x64xf32>
    %100 = vector.shape_cast %99 : vector<1x64x64xf32> to vector<64x64xf32>
    %cst_70 = arith.constant dense<0.000000e+00> : vector<64x256xf32>
    %101 = tpu.matmul %100, %98, %cst_70 {dimension_numbers = #tpu.dot_dimension_numbers<[1], [0], [0], [1], [0, 0, 1, 1], [], []>} : vector<64x64xf32>, vector<64x256xf32>, vector<64x256xf32> -> vector<64x256xf32>
    %c2_71 = arith.constant 2 : index
    %c0_72 = arith.constant 0 : index
    %c0_73 = arith.constant 0 : index
    %102 = vector.load %arg6[%c2_71, %c0_72, %c0_73] : memref<4x64x1xf32, #tpu.memory_space<vmem>>, vector<1x64x1xf32>
    %103 = vector.shape_cast %102 : vector<1x64x1xf32> to vector<64x1xf32>
    %104 = vector.broadcast %103 : vector<64x1xf32> to vector<64x256xf32>
    %105 = arith.addf %101, %104 : vector<64x256xf32>
    %cst_74 = arith.constant 0.000000e+00 : f32
    %106 = vector.broadcast %cst_74 : f32 to vector<64x256xf32>
    %107 = arith.maximumf %105, %106 : vector<64x256xf32>
    %c2_75 = arith.constant 2 : index
    %c0_76 = arith.constant 0 : index
    %c0_77 = arith.constant 0 : index
    %108 = vector.load %arg7[%c2_75, %c0_76, %c0_77] : memref<4x16x64xf32, #tpu.memory_space<vmem>>, vector<1x16x64xf32>
    %109 = vector.shape_cast %108 : vector<1x16x64xf32> to vector<16x64xf32>
    %cst_78 = arith.constant dense<0.000000e+00> : vector<16x256xf32>
    %110 = tpu.matmul %109, %107, %cst_78 {dimension_numbers = #tpu.dot_dimension_numbers<[1], [0], [0], [1], [0, 0, 1, 1], [], []>} : vector<16x64xf32>, vector<64x256xf32>, vector<16x256xf32> -> vector<16x256xf32>
    %c2_79 = arith.constant 2 : index
    %c0_80 = arith.constant 0 : index
    %c0_81 = arith.constant 0 : index
    %111 = vector.load %arg8[%c2_79, %c0_80, %c0_81] : memref<4x16x1xf32, #tpu.memory_space<vmem>>, vector<1x16x1xf32>
    %112 = vector.shape_cast %111 : vector<1x16x1xf32> to vector<16x1xf32>
    %113 = vector.broadcast %112 : vector<16x1xf32> to vector<16x256xf32>
    %114 = arith.addf %110, %113 : vector<16x256xf32>
    %115 = vector.extract_strided_slice %114 {offsets = [0, 0], sizes = [8, 256], strides = [1, 1]} : vector<16x256xf32> to vector<8x256xf32>
    %116 = math.tanh %115 : vector<8x256xf32>
    %117 = vector.extract_strided_slice %114 {offsets = [8, 0], sizes = [8, 256], strides = [1, 1]} : vector<16x256xf32> to vector<8x256xf32>
    %118 = math.exp %116 : vector<8x256xf32>
    %119 = vector.broadcast %89 : vector<8x1xf32> to vector<8x256xf32>
    %120 = arith.mulf %119, %118 : vector<8x256xf32>
    %121 = vector.broadcast %87 : vector<8x1xf32> to vector<8x256xf32>
    %122 = arith.addf %121, %120 : vector<8x256xf32>
    %123 = arith.mulf %82, %122 : vector<8x256xf32>
    %124 = arith.addf %123, %117 : vector<8x256xf32>
    %cst_82 = arith.constant dense<0.000000e+00> : vector<256xf32>
    %125 = vector.multi_reduction <add>, %116, %cst_82 [0] : vector<8x256xf32> to vector<256xf32>
    %126 = vector.shape_cast %125 : vector<256xf32> to vector<1x256xf32>
    %127 = arith.addf %85, %126 : vector<1x256xf32>
    %c3 = arith.constant 3 : index
    %c0_83 = arith.constant 0 : index
    %c0_84 = arith.constant 0 : index
    %128 = vector.load %arg2[%c3, %c0_83, %c0_84] : memref<4x8x1xf32, #tpu.memory_space<vmem>>, vector<1x8x1xf32>
    %129 = vector.shape_cast %128 : vector<1x8x1xf32> to vector<8x1xf32>
    %cst_85 = arith.constant 1.000000e+00 : f32
    %130 = vector.broadcast %cst_85 : f32 to vector<8x1xf32>
    %131 = arith.subf %130, %129 : vector<8x1xf32>
    %c3_86 = arith.constant 3 : index
    %c0_87 = arith.constant 0 : index
    %c0_88 = arith.constant 0 : index
    %132 = vector.load %arg3[%c3_86, %c0_87, %c0_88] : memref<4x64x8xf32, #tpu.memory_space<vmem>>, vector<1x64x8xf32>
    %133 = vector.shape_cast %132 : vector<1x64x8xf32> to vector<64x8xf32>
    %cst_89 = arith.constant dense<0.000000e+00> : vector<64x256xf32>
    %134 = tpu.matmul %133, %124, %cst_89 {dimension_numbers = #tpu.dot_dimension_numbers<[1], [0], [0], [1], [0, 0, 1, 1], [], []>} : vector<64x8xf32>, vector<8x256xf32>, vector<64x256xf32> -> vector<64x256xf32>
    %c3_90 = arith.constant 3 : index
    %c0_91 = arith.constant 0 : index
    %c0_92 = arith.constant 0 : index
    %135 = vector.load %arg4[%c3_90, %c0_91, %c0_92] : memref<4x64x1xf32, #tpu.memory_space<vmem>>, vector<1x64x1xf32>
    %136 = vector.shape_cast %135 : vector<1x64x1xf32> to vector<64x1xf32>
    %137 = vector.broadcast %136 : vector<64x1xf32> to vector<64x256xf32>
    %138 = arith.addf %134, %137 : vector<64x256xf32>
    %cst_93 = arith.constant 0.000000e+00 : f32
    %139 = vector.broadcast %cst_93 : f32 to vector<64x256xf32>
    %140 = arith.maximumf %138, %139 : vector<64x256xf32>
    %c3_94 = arith.constant 3 : index
    %c0_95 = arith.constant 0 : index
    %c0_96 = arith.constant 0 : index
    %141 = vector.load %arg5[%c3_94, %c0_95, %c0_96] : memref<4x64x64xf32, #tpu.memory_space<vmem>>, vector<1x64x64xf32>
    %142 = vector.shape_cast %141 : vector<1x64x64xf32> to vector<64x64xf32>
    %cst_97 = arith.constant dense<0.000000e+00> : vector<64x256xf32>
    %143 = tpu.matmul %142, %140, %cst_97 {dimension_numbers = #tpu.dot_dimension_numbers<[1], [0], [0], [1], [0, 0, 1, 1], [], []>} : vector<64x64xf32>, vector<64x256xf32>, vector<64x256xf32> -> vector<64x256xf32>
    %c3_98 = arith.constant 3 : index
    %c0_99 = arith.constant 0 : index
    %c0_100 = arith.constant 0 : index
    %144 = vector.load %arg6[%c3_98, %c0_99, %c0_100] : memref<4x64x1xf32, #tpu.memory_space<vmem>>, vector<1x64x1xf32>
    %145 = vector.shape_cast %144 : vector<1x64x1xf32> to vector<64x1xf32>
    %146 = vector.broadcast %145 : vector<64x1xf32> to vector<64x256xf32>
    %147 = arith.addf %143, %146 : vector<64x256xf32>
    %cst_101 = arith.constant 0.000000e+00 : f32
    %148 = vector.broadcast %cst_101 : f32 to vector<64x256xf32>
    %149 = arith.maximumf %147, %148 : vector<64x256xf32>
    %c3_102 = arith.constant 3 : index
    %c0_103 = arith.constant 0 : index
    %c0_104 = arith.constant 0 : index
    %150 = vector.load %arg7[%c3_102, %c0_103, %c0_104] : memref<4x16x64xf32, #tpu.memory_space<vmem>>, vector<1x16x64xf32>
    %151 = vector.shape_cast %150 : vector<1x16x64xf32> to vector<16x64xf32>
    %cst_105 = arith.constant dense<0.000000e+00> : vector<16x256xf32>
    %152 = tpu.matmul %151, %149, %cst_105 {dimension_numbers = #tpu.dot_dimension_numbers<[1], [0], [0], [1], [0, 0, 1, 1], [], []>} : vector<16x64xf32>, vector<64x256xf32>, vector<16x256xf32> -> vector<16x256xf32>
    %c3_106 = arith.constant 3 : index
    %c0_107 = arith.constant 0 : index
    %c0_108 = arith.constant 0 : index
    %153 = vector.load %arg8[%c3_106, %c0_107, %c0_108] : memref<4x16x1xf32, #tpu.memory_space<vmem>>, vector<1x16x1xf32>
    %154 = vector.shape_cast %153 : vector<1x16x1xf32> to vector<16x1xf32>
    %155 = vector.broadcast %154 : vector<16x1xf32> to vector<16x256xf32>
    %156 = arith.addf %152, %155 : vector<16x256xf32>
    %157 = vector.extract_strided_slice %156 {offsets = [0, 0], sizes = [8, 256], strides = [1, 1]} : vector<16x256xf32> to vector<8x256xf32>
    %158 = math.tanh %157 : vector<8x256xf32>
    %159 = vector.extract_strided_slice %156 {offsets = [8, 0], sizes = [8, 256], strides = [1, 1]} : vector<16x256xf32> to vector<8x256xf32>
    %160 = math.exp %158 : vector<8x256xf32>
    %161 = vector.broadcast %131 : vector<8x1xf32> to vector<8x256xf32>
    %162 = arith.mulf %161, %160 : vector<8x256xf32>
    %163 = vector.broadcast %129 : vector<8x1xf32> to vector<8x256xf32>
    %164 = arith.addf %163, %162 : vector<8x256xf32>
    %165 = arith.mulf %124, %164 : vector<8x256xf32>
    %166 = arith.addf %165, %159 : vector<8x256xf32>
    %cst_109 = arith.constant dense<0.000000e+00> : vector<256xf32>
    %167 = vector.multi_reduction <add>, %158, %cst_109 [0] : vector<8x256xf32> to vector<256xf32>
    %168 = vector.shape_cast %167 : vector<256xf32> to vector<1x256xf32>
    %169 = arith.addf %127, %168 : vector<1x256xf32>
    %170 = vector.extract_strided_slice %166 {offsets = [0, 0], sizes = [4, 256], strides = [1, 1]} : vector<8x256xf32> to vector<4x256xf32>
    %c0_110 = arith.constant 0 : index
    %c0_111 = arith.constant 0 : index
    %171 = vector.load %arg9[%c0_110, %c0_111] : memref<4x256xf32, #tpu.memory_space<vmem>>, vector<4x256xf32>
    tpu.vector_store %arg9[%c0_110, %c0_111], %170 {strides = array<i32>} : memref<4x256xf32, #tpu.memory_space<vmem>>, vector<4x256xf32>,
    %c0_112 = arith.constant 0 : index
    %c0_113 = arith.constant 0 : index
    %172 = vector.load %arg10[%c0_112, %c0_113] : memref<1x256xf32, #tpu.memory_space<vmem>>, vector<1x256xf32>
    tpu.vector_store %arg10[%c0_112, %c0_113], %169 {strides = array<i32>} : memref<1x256xf32, #tpu.memory_space<vmem>>, vector<1x256xf32>,
    return
  }
  func.func @transform_0(%arg0: i32) -> (i32, i32) {
    %c0_i32 = arith.constant 0 : i32
    %c0_i32_0 = arith.constant 0 : i32
    return %c0_i32, %arg0 : i32, i32
  }
  func.func @transform_1(%arg0: i32) -> (i32, i32, i32) {
    %c0_i32 = arith.constant 0 : i32
    %c0_i32_0 = arith.constant 0 : i32
    %c0_i32_1 = arith.constant 0 : i32
    %c0_i32_2 = arith.constant 0 : i32
    return %c0_i32, %c0_i32_0, %c0_i32_1 : i32, i32, i32
  }
  func.func @transform_2(%arg0: i32) -> (i32, i32, i32) {
    %c0_i32 = arith.constant 0 : i32
    %c0_i32_0 = arith.constant 0 : i32
    %c0_i32_1 = arith.constant 0 : i32
    %c0_i32_2 = arith.constant 0 : i32
    return %c0_i32, %c0_i32_0, %c0_i32_1 : i32, i32, i32
  }
  func.func @transform_3(%arg0: i32) -> (i32, i32, i32) {
    %c0_i32 = arith.constant 0 : i32
    %c0_i32_0 = arith.constant 0 : i32
    %c0_i32_1 = arith.constant 0 : i32
    %c0_i32_2 = arith.constant 0 : i32
    return %c0_i32, %c0_i32_0, %c0_i32_1 : i32, i32, i32
  }
  func.func @transform_4(%arg0: i32) -> (i32, i32, i32) {
    %c0_i32 = arith.constant 0 : i32
    %c0_i32_0 = arith.constant 0 : i32
    %c0_i32_1 = arith.constant 0 : i32
    %c0_i32_2 = arith.constant 0 : i32
    return %c0_i32, %c0_i32_0, %c0_i32_1 : i32, i32, i32
  }
  func.func @transform_5(%arg0: i32) -> (i32, i32, i32) {
    %c0_i32 = arith.constant 0 : i32
    %c0_i32_0 = arith.constant 0 : i32
    %c0_i32_1 = arith.constant 0 : i32
    %c0_i32_2 = arith.constant 0 : i32
    return %c0_i32, %c0_i32_0, %c0_i32_1 : i32, i32, i32
  }
  func.func @transform_6(%arg0: i32) -> (i32, i32, i32) {
    %c0_i32 = arith.constant 0 : i32
    %c0_i32_0 = arith.constant 0 : i32
    %c0_i32_1 = arith.constant 0 : i32
    %c0_i32_2 = arith.constant 0 : i32
    return %c0_i32, %c0_i32_0, %c0_i32_1 : i32, i32, i32
  }
  func.func @transform_7(%arg0: i32) -> (i32, i32, i32) {
    %c0_i32 = arith.constant 0 : i32
    %c0_i32_0 = arith.constant 0 : i32
    %c0_i32_1 = arith.constant 0 : i32
    %c0_i32_2 = arith.constant 0 : i32
    return %c0_i32, %c0_i32_0, %c0_i32_1 : i32, i32, i32
  }
  func.func @transform_8(%arg0: i32) -> (i32, i32) {
    %c0_i32 = arith.constant 0 : i32
    %c0_i32_0 = arith.constant 0 : i32
    return %c0_i32, %arg0 : i32, i32
  }
  func.func @transform_9(%arg0: i32) -> (i32, i32) {
    %c0_i32 = arith.constant 0 : i32
    %c0_i32_0 = arith.constant 0 : i32
    return %c0_i32, %arg0 : i32, i32
  }
}

</mosaic_0001>

<llo_original>
// kernel: tpu_custom_call.1
$region0: #{tpu_custom_call.1}
  #allocation0 [shape = 'u32[]', space=smem, size = 0x4, offset = 0x4, fixed_abs, tag = 'smem constant byte address 0x4 - core index']
  #allocation1 [shape = 'u32[144,128]{1,0:T(1,128)}', space=vmem, size = 0x12000, scoped, tag = 'internal scratch']
  %s0 = inlined_call_operand.vmem [shape: f32[8,256], index: 0, kind: input, shape index: {}]
  %s1 = inlined_call_operand.vmem [shape: f32[4,8,1], index: 1, kind: input, shape index: {}]
  %s2 = inlined_call_operand.vmem [shape: f32[4,64,8], index: 2, kind: input, shape index: {}]
  %s3 = inlined_call_operand.vmem [shape: f32[4,64,1], index: 3, kind: input, shape index: {}]
  %s4 = inlined_call_operand.vmem [shape: f32[4,64,64], index: 4, kind: input, shape index: {}]
  %s5 = inlined_call_operand.vmem [shape: f32[4,64,1], index: 5, kind: input, shape index: {}]
  %s6 = inlined_call_operand.vmem [shape: f32[4,16,64], index: 6, kind: input, shape index: {}]
  %s7 = inlined_call_operand.vmem [shape: f32[4,16,1], index: 7, kind: input, shape index: {}]
  %s8 = inlined_call_operand.hbm [shape: f32[4,256], index: 8, kind: output, shape index: {0}]
  %s9 = inlined_call_operand.hbm [shape: f32[1,256], index: 9, kind: output, shape index: {1}]
  %10 = xla_tuple %s8, %s9
  %s11 = sld [smem:[#allocation0]]
  $region50: #{tpu_custom_call.1} parent=0
    _
  %s13 = ssub.s32 1, %s11
  %s14 = scalar_select 0, %s13, %s11
  $region1: #{tpu_custom_call.1} parent=0
    #allocation2 [shape = 'u8[4096]{0}', space=vmem, size = 0x1000, scoped, tag = 'output window, operand 0, single buffered']
    #allocation3 [shape = 's32[1]{0}', space=sflag, size = 0x4, scoped, tag = 'scoped memory for tpu_custom_call.1']
    #allocation4 [shape = 'u8[1024]{0}', space=vmem, size = 0x400, scoped, tag = 'output window, operand 1, single buffered']
    #allocation5 [shape = 's32[1]{0}', space=sflag, size = 0x4, scoped, tag = 'scoped memory for tpu_custom_call.1']
    %15 = vsyncpa [#allocation3], 0
    %16 = vsyncpa [#allocation5], 0
    // Predicated region
    $region2: #{tpu_custom_call.1} parent=1 // pred_check
      _
    $region3: #{tpu_custom_call.1} parent=1 // pred_check_branch
      %18 = sbr.rel (0) target = $region5
    $region4: #{tpu_custom_call.1} parent=1 // pred_region
      _
    $region5: #{tpu_custom_call.1} parent=1 // pred_fallthru
      _
    // Predicated region
    $region6: #{tpu_custom_call.1} parent=1 // pred_check
      _
    $region7: #{tpu_custom_call.1} parent=1 // pred_check_branch
      %20 = sbr.rel (0) target = $region9
    $region8: #{tpu_custom_call.1} parent=1 // pred_region
      _
    $region9: #{tpu_custom_call.1} parent=1 // pred_fallthru
      _
    // Predicated region
    $region10: #{tpu_custom_call.1} parent=1 // pred_check
      _
    $region11: #{tpu_custom_call.1} parent=1 // pred_check_branch
      %22 = sbr.rel (0) target = $region13
    $region12: #{tpu_custom_call.1} parent=1 // pred_region
      _
    $region13: #{tpu_custom_call.1} parent=1 // pred_fallthru
      _
    // Predicated region
    $region14: #{tpu_custom_call.1} parent=1 // pred_check
      _
    $region15: #{tpu_custom_call.1} parent=1 // pred_check_branch
      %24 = sbr.rel (0) target = $region17
    $region16: #{tpu_custom_call.1} parent=1 // pred_region
      _
    $region17: #{tpu_custom_call.1} parent=1 // pred_fallthru
      _
    // Predicated region
    $region18: #{tpu_custom_call.1} parent=1 // pred_check
      _
    $region19: #{tpu_custom_call.1} parent=1 // pred_check_branch
      %26 = sbr.rel (0) target = $region21
    $region20: #{tpu_custom_call.1} parent=1 // pred_region
      _
    $region21: #{tpu_custom_call.1} parent=1 // pred_fallthru
      _
    // Predicated region
    $region22: #{tpu_custom_call.1} parent=1 // pred_check
      _
    $region23: #{tpu_custom_call.1} parent=1 // pred_check_branch
      %28 = sbr.rel (0) target = $region25
    $region24: #{tpu_custom_call.1} parent=1 // pred_region
      _
    $region25: #{tpu_custom_call.1} parent=1 // pred_fallthru
      _
    // Predicated region
    $region26: #{tpu_custom_call.1} parent=1 // pred_check
      _
    $region27: #{tpu_custom_call.1} parent=1 // pred_check_branch
      %30 = sbr.rel (0) target = $region29
    $region28: #{tpu_custom_call.1} parent=1 // pred_region
      _
    $region29: #{tpu_custom_call.1} parent=1 // pred_fallthru
      _
    // Predicated region
    $region30: #{tpu_custom_call.1} parent=1 // pred_check
      _
    $region31: #{tpu_custom_call.1} parent=1 // pred_check_branch
      %32 = sbr.rel (0) target = $region33
    $region32: #{tpu_custom_call.1} parent=1 // pred_region
      _
    $region33: #{tpu_custom_call.1} parent=1 // pred_fallthru
      _
    %v33 = vld [vmem:[%s0] sm:$0xff]
    %v34 = vld [vmem:[%s0 + $0x8] sm:$0xff]
    %v35 = vld [vmem:[%s1] sm:$0xff]
    %v36 = vsub.f32 1.0, %v35
    %v37 = vld [vmem:[%s2] sm:$0xff]
    %v38 = vld [vmem:[%s2 + $0x8] sm:$0xff]
    %v39 = vld [vmem:[%s2 + $0x10] sm:$0xff]
    %v40 = vld [vmem:[%s2 + $0x18] sm:$0xff]
    %v41 = vld [vmem:[%s2 + $0x20] sm:$0xff]
    %v42 = vld [vmem:[%s2 + $0x28] sm:$0xff]
    %v43 = vld [vmem:[%s2 + $0x30] sm:$0xff]
    %v44 = vld [vmem:[%s2 + $0x38] sm:$0xff]
    %v45 = vld [vmem:[%s3] sm:$0xff]
    %v46 = vld [vmem:[%s3 + $0x8] sm:$0xff]
    %v47 = vld [vmem:[%s3 + $0x10] sm:$0xff]
    %v48 = vld [vmem:[%s3 + $0x18] sm:$0xff]
    %v49 = vld [vmem:[%s3 + $0x20] sm:$0xff]
    %v50 = vld [vmem:[%s3 + $0x28] sm:$0xff]
    %v51 = vld [vmem:[%s3 + $0x30] sm:$0xff]
    %v52 = vld [vmem:[%s3 + $0x38] sm:$0xff]
    %54 = vset.pattern.permute.xlu0 0
    %55 = vperm.xlu0 %54, %v45
    %v56 = vpop.permute.xlu0 %55
    %59 = vset.pattern.permute.xlu0 0
    %60 = vperm.xlu0 %59, %v46
    %v61 = vpop.permute.xlu0 %60
    %64 = vset.pattern.permute.xlu0 0
    %65 = vperm.xlu0 %64, %v47
    %v66 = vpop.permute.xlu0 %65
    %69 = vset.pattern.permute.xlu0 0
    %70 = vperm.xlu0 %69, %v48
    %v71 = vpop.permute.xlu0 %70
    %74 = vset.pattern.permute.xlu0 0
    %75 = vperm.xlu0 %74, %v49
    %v76 = vpop.permute.xlu0 %75
    %79 = vset.pattern.permute.xlu0 0
    %80 = vperm.xlu0 %79, %v50
    %v81 = vpop.permute.xlu0 %80
    %84 = vset.pattern.permute.xlu0 0
    %85 = vperm.xlu0 %84, %v51
    %v86 = vpop.permute.xlu0 %85
    %89 = vset.pattern.permute.xlu0 0
    %90 = vperm.xlu0 %89, %v52
    %v91 = vpop.permute.xlu0 %90
    %vm93 = vcmask 64512
    %v95 = vsel %vm93, %v37, 0
    %v98 = vsel %vm93, %v38, 0
    %v101 = vsel %vm93, %v39, 0
    %v104 = vsel %vm93, %v40, 0
    %v107 = vsel %vm93, %v41, 0
    %v110 = vsel %vm93, %v42, 0
    %v113 = vsel %vm93, %v43, 0
    %v116 = vsel %vm93, %v44, 0
    %118 = vmatprep.subr.mxu0 0.0
    %119 = vmatpush1.msra.mxu0 0.0
    %120 = vmatprep.subr.mxu0 0.0
    %121 = vmatpush1.msra.mxu0 0.0
    %122 = vmatprep.subr.mxu0 0.0
    %123 = vmatpush1.msra.mxu0 0.0
    %124 = vmatprep.subr.mxu0 0.0
    %125 = vmatpush1.msra.mxu0 0.0
    %126 = vmatprep.subr.mxu0 0.0
    %127 = vmatpush1.msra.mxu0 0.0
    %128 = vmatprep.subr.mxu0 0.0
    %129 = vmatpush1.msra.mxu0 0.0
    %130 = vmatprep.subr.mxu0 0.0
    %131 = vmatpush1.msra.mxu0 0.0
    %132 = vmatprep.subr.mxu0 0.0
    %133 = vmatpush1.msra.mxu0 0.0
    %134 = vmatprep.subr.mxu0 0.0
    %135 = vmatpush1.msra.mxu0 0.0
    %136 = vmatprep.subr.mxu0 0.0
    %137 = vmatpush1.msra.mxu0 0.0
    %138 = vmatprep.subr.mxu0 0.0
    %139 = vmatpush1.msra.mxu0 0.0
    %140 = vmatprep.subr.mxu0 0.0
    %141 = vmatpush1.msra.mxu0 0.0
    %142 = vmatprep.subr.mxu0 0.0
    %143 = vmatpush1.msra.mxu0 0.0
    %144 = vmatprep.subr.mxu0 0.0
    %145 = vmatpush1.msra.mxu0 0.0
    %146 = vmatprep.subr.mxu0 0.0
    %147 = vmatpush1.msra.mxu0 0.0
    %148 = vmatprep.subr.mxu0 %v34
    %149 = vmatpush1.msra.mxu0 %v33
    %150 = vmatprep.subr.mxu0 0.0
    %151 = vmatpush2.msra.mxu0 0.0
    %152 = vmatprep.subr.mxu0 0.0
    %153 = vmatpush2.msra.mxu0 0.0
    %154 = vmatprep.subr.mxu0 0.0
    %155 = vmatpush2.msra.mxu0 0.0
    %156 = vmatprep.subr.mxu0 0.0
    %157 = vmatpush2.msra.mxu0 0.0
    %158 = vmatprep.subr.mxu0 0.0
    %159 = vmatpush2.msra.mxu0 0.0
    %160 = vmatprep.subr.mxu0 0.0
    %161 = vmatpush2.msra.mxu0 0.0
    %162 = vmatprep.subr.mxu0 0.0
    %163 = vmatpush2.msra.mxu0 0.0
    %164 = vmatprep.subr.mxu0 0.0
    %165 = vmatpush2.msra.mxu0 0.0
    %166 = vmatprep.subr.mxu0 0.0
    %167 = vmatpush2.msra.mxu0 0.0
    %168 = vmatprep.subr.mxu0 0.0
    %169 = vmatpush2.msra.mxu0 0.0
    %170 = vmatprep.subr.mxu0 0.0
    %171 = vmatpush2.msra.mxu0 0.0
    %172 = vmatprep.subr.mxu0 0.0
    %173 = vmatpush2.msra.mxu0 0.0
    %174 = vmatprep.subr.mxu0 0.0
    %175 = vmatpush2.msra.mxu0 0.0
    %176 = vmatprep.subr.mxu0 0.0
    %177 = vmatpush2.msra.mxu0 0.0
    %178 = vmatprep.subr.mxu0 0.0
    %179 = vmatpush2.msra.mxu0 0.0
    %180 = vmatprep.subr.mxu0 0.0
    %181 = vmatpush2.msra.mxu0 0.0
    %182 = vmatprep.mubr.f32.mxu0 0.0
    %183 = vmatmul.mubr.f32.gmra.mxu0 %v95
    %v184 = vpop.f32.mrf.mxu0
    %v185 = vadd.f32 %v56, %v184
    %v186 = vpop.f32.mrf.mxu0
    %v187 = vadd.f32 %v56, %v186
    %188 = vmatprep.mubr.f32.mxu0 0.0
    %189 = vmatmul.mubr.f32.gmra.mxu0 %v98
    %v190 = vpop.f32.mrf.mxu0
    %v191 = vadd.f32 %v61, %v190
    %v192 = vpop.f32.mrf.mxu0
    %v193 = vadd.f32 %v61, %v192
    %194 = vmatprep.mubr.f32.mxu0 0.0
    %195 = vmatmul.mubr.f32.gmra.mxu0 %v101
    %v196 = vpop.f32.mrf.mxu0
    %v197 = vadd.f32 %v66, %v196
    %v198 = vpop.f32.mrf.mxu0
    %v199 = vadd.f32 %v66, %v198
    %200 = vmatprep.mubr.f32.mxu0 0.0
    %201 = vmatmul.mubr.f32.gmra.mxu0 %v104
    %v202 = vpop.f32.mrf.mxu0
    %v203 = vadd.f32 %v71, %v202
    %v204 = vpop.f32.mrf.mxu0
    %v205 = vadd.f32 %v71, %v204
    %206 = vmatprep.mubr.f32.mxu0 0.0
    %207 = vmatmul.mubr.f32.gmra.mxu0 %v107
    %v208 = vpop.f32.mrf.mxu0
    %v209 = vadd.f32 %v76, %v208
    %v210 = vpop.f32.mrf.mxu0
    %v211 = vadd.f32 %v76, %v210
    %212 = vmatprep.mubr.f32.mxu0 0.0
    %213 = vmatmul.mubr.f32.gmra.mxu0 %v110
    %v214 = vpop.f32.mrf.mxu0
    %v215 = vadd.f32 %v81, %v214
    %v216 = vpop.f32.mrf.mxu0
    %v217 = vadd.f32 %v81, %v216
    %218 = vmatprep.mubr.f32.mxu0 0.0
    %219 = vmatmul.mubr.f32.gmra.mxu0 %v113
    %v220 = vpop.f32.mrf.mxu0
    %v221 = vadd.f32 %v86, %v220
    %v222 = vpop.f32.mrf.mxu0
    %v223 = vadd.f32 %v86, %v222
    %224 = vmatprep.mubr.f32.mxu0 0.0
    %225 = vmatmul.mubr.f32.gmra.mxu0 %v116
    %v226 = vpop.f32.mrf.mxu0
    %v227 = vadd.f32 %v91, %v226
    %v228 = vpop.f32.mrf.mxu0
    %v229 = vadd.f32 %v91, %v228
    %230 = vdwg.mxu0
    %v231 = vmax.f32 %v185, 0.0
    %v232 = vmax.f32 %v187, 0.0
    %v233 = vmax.f32 %v191, 0.0
    %v234 = vmax.f32 %v193, 0.0
    %v235 = vmax.f32 %v197, 0.0
    %v236 = vmax.f32 %v199, 0.0
    %v237 = vmax.f32 %v203, 0.0
    %v238 = vmax.f32 %v205, 0.0
    %v239 = vmax.f32 %v209, 0.0
    %v240 = vmax.f32 %v211, 0.0
    %v241 = vmax.f32 %v215, 0.0
    %v242 = vmax.f32 %v217, 0.0
    %v243 = vmax.f32 %v221, 0.0
    %v244 = vmax.f32 %v223, 0.0
    %v245 = vmax.f32 %v227, 0.0
    %v246 = vmax.f32 %v229, 0.0
    %v247 = vld [vmem:[%s4] sm:$0xff]
    %v248 = vld [vmem:[%s4 + $0x8] sm:$0xff]
    %v249 = vld [vmem:[%s4 + $0x10] sm:$0xff]
    %v250 = vld [vmem:[%s4 + $0x18] sm:$0xff]
    %v251 = vld [vmem:[%s4 + $0x20] sm:$0xff]
    %v252 = vld [vmem:[%s4 + $0x28] sm:$0xff]
    %v253 = vld [vmem:[%s4 + $0x30] sm:$0xff]
    %v254 = vld [vmem:[%s4 + $0x38] sm:$0xff]
    %v255 = vld [vmem:[%s5] sm:$0xff]
    %v256 = vld [vmem:[%s5 + $0x8] sm:$0xff]
    %v257 = vld [vmem:[%s5 + $0x10] sm:$0xff]
    %v258 = vld [vmem:[%s5 + $0x18] sm:$0xff]
    %v259 = vld [vmem:[%s5 + $0x20] sm:$0xff]
    %v260 = vld [vmem:[%s5 + $0x28] sm:$0xff]
    %v261 = vld [vmem:[%s5 + $0x30] sm:$0xff]
    %v262 = vld [vmem:[%s5 + $0x38] sm:$0xff]
    %264 = vset.pattern.permute.xlu0 0
    %265 = vperm.xlu0 %264, %v255
    %v266 = vpop.permute.xlu0 %265
    %269 = vset.pattern.permute.xlu0 0
    %270 = vperm.xlu0 %269, %v256
    %v271 = vpop.permute.xlu0 %270
    %274 = vset.pattern.permute.xlu0 0
    %275 = vperm.xlu0 %274, %v257
    %v276 = vpop.permute.xlu0 %275
    %279 = vset.pattern.permute.xlu0 0
    %280 = vperm.xlu0 %279, %v258
    %v281 = vpop.permute.xlu0 %280
    %284 = vset.pattern.permute.xlu0 0
    %285 = vperm.xlu0 %284, %v259
    %v286 = vpop.permute.xlu0 %285
    %289 = vset.pattern.permute.xlu0 0
    %290 = vperm.xlu0 %289, %v260
    %v291 = vpop.permute.xlu0 %290
    %294 = vset.pattern.permute.xlu0 0
    %295 = vperm.xlu0 %294, %v261
    %v296 = vpop.permute.xlu0 %295
    %299 = vset.pattern.permute.xlu0 0
    %300 = vperm.xlu0 %299, %v262
    %v301 = vpop.permute.xlu0 %300
    %vm303 = vcmask 523264
    %v305 = vsel %vm303, %v247, 0
    %v308 = vsel %vm303, %v248, 0
    %v311 = vsel %vm303, %v249, 0
    %v314 = vsel %vm303, %v250, 0
    %v317 = vsel %vm303, %v251, 0
    %v320 = vsel %vm303, %v252, 0
    %v323 = vsel %vm303, %v253, 0
    %v326 = vsel %vm303, %v254, 0
    %328 = vmatprep.subr.mxu0 0.0
    %329 = vmatpush1.msra.mxu0 0.0
    %330 = vmatprep.subr.mxu0 0.0
    %331 = vmatpush1.msra.mxu0 0.0
    %332 = vmatprep.subr.mxu0 0.0
    %333 = vmatpush1.msra.mxu0 0.0
    %334 = vmatprep.subr.mxu0 0.0
    %335 = vmatpush1.msra.mxu0 0.0
    %336 = vmatprep.subr.mxu0 0.0
    %337 = vmatpush1.msra.mxu0 0.0
    %338 = vmatprep.subr.mxu0 0.0
    %339 = vmatpush1.msra.mxu0 0.0
    %340 = vmatprep.subr.mxu0 0.0
    %341 = vmatpush1.msra.mxu0 0.0
    %342 = vmatprep.subr.mxu0 0.0
    %343 = vmatpush1.msra.mxu0 0.0
    %344 = vmatprep.subr.mxu0 %v246
    %345 = vmatpush1.msra.mxu0 %v245
    %346 = vmatprep.subr.mxu0 %v244
    %347 = vmatpush1.msra.mxu0 %v243
    %348 = vmatprep.subr.mxu0 %v242
    %349 = vmatpush1.msra.mxu0 %v241
    %350 = vmatprep.subr.mxu0 %v240
    %351 = vmatpush1.msra.mxu0 %v239
    %352 = vmatprep.subr.mxu0 %v238
    %353 = vmatpush1.msra.mxu0 %v237
    %354 = vmatprep.subr.mxu0 %v236
    %355 = vmatpush1.msra.mxu0 %v235
    %356 = vmatprep.subr.mxu0 %v234
    %357 = vmatpush1.msra.mxu0 %v233
    %358 = vmatprep.subr.mxu0 %v232
    %359 = vmatpush1.msra.mxu0 %v231
    %360 = vmatprep.subr.mxu0 0.0
    %361 = vmatpush2.msra.mxu0 0.0
    %362 = vmatprep.subr.mxu0 0.0
    %363 = vmatpush2.msra.mxu0 0.0
    %364 = vmatprep.subr.mxu0 0.0
    %365 = vmatpush2.msra.mxu0 0.0
    %366 = vmatprep.subr.mxu0 0.0
    %367 = vmatpush2.msra.mxu0 0.0
    %368 = vmatprep.subr.mxu0 0.0
    %369 = vmatpush2.msra.mxu0 0.0
    %370 = vmatprep.subr.mxu0 0.0
    %371 = vmatpush2.msra.mxu0 0.0
    %372 = vmatprep.subr.mxu0 0.0
    %373 = vmatpush2.msra.mxu0 0.0
    %374 = vmatprep.subr.mxu0 0.0
    %375 = vmatpush2.msra.mxu0 0.0
    %376 = vmatprep.subr.mxu0 0.0
    %377 = vmatpush2.msra.mxu0 0.0
    %378 = vmatprep.subr.mxu0 0.0
    %379 = vmatpush2.msra.mxu0 0.0
    %380 = vmatprep.subr.mxu0 0.0
    %381 = vmatpush2.msra.mxu0 0.0
    %382 = vmatprep.subr.mxu0 0.0
    %383 = vmatpush2.msra.mxu0 0.0
    %384 = vmatprep.subr.mxu0 0.0
    %385 = vmatpush2.msra.mxu0 0.0
    %386 = vmatprep.subr.mxu0 0.0
    %387 = vmatpush2.msra.mxu0 0.0
    %388 = vmatprep.subr.mxu0 0.0
    %389 = vmatpush2.msra.mxu0 0.0
    %390 = vmatprep.subr.mxu0 0.0
    %391 = vmatpush2.msra.mxu0 0.0
    %392 = vmatprep.mubr.f32.mxu0 0.0
    %393 = vmatmul.mubr.f32.gmra.mxu0 %v305
    %v394 = vpop.f32.mrf.mxu0
    %v395 = vadd.f32 %v266, %v394
    %v396 = vpop.f32.mrf.mxu0
    %v397 = vadd.f32 %v266, %v396
    %398 = vmatprep.mubr.f32.mxu0 0.0
    %399 = vmatmul.mubr.f32.gmra.mxu0 %v308
    %v400 = vpop.f32.mrf.mxu0
    %v401 = vadd.f32 %v271, %v400
    %v402 = vpop.f32.mrf.mxu0
    %v403 = vadd.f32 %v271, %v402
    %404 = vmatprep.mubr.f32.mxu0 0.0
    %405 = vmatmul.mubr.f32.gmra.mxu0 %v311
    %v406 = vpop.f32.mrf.mxu0
    %v407 = vadd.f32 %v276, %v406
    %v408 = vpop.f32.mrf.mxu0
    %v409 = vadd.f32 %v276, %v408
    %410 = vmatprep.mubr.f32.mxu0 0.0
    %411 = vmatmul.mubr.f32.gmra.mxu0 %v314
    %v412 = vpop.f32.mrf.mxu0
    %v413 = vadd.f32 %v281, %v412
    %v414 = vpop.f32.mrf.mxu0
    %v415 = vadd.f32 %v281, %v414
    %416 = vmatprep.mubr.f32.mxu0 0.0
    %417 = vmatmul.mubr.f32.gmra.mxu0 %v317
    %v418 = vpop.f32.mrf.mxu0
    %v419 = vadd.f32 %v286, %v418
    %v420 = vpop.f32.mrf.mxu0
    %v421 = vadd.f32 %v286, %v420
    %422 = vmatprep.mubr.f32.mxu0 0.0
    %423 = vmatmul.mubr.f32.gmra.mxu0 %v320
    %v424 = vpop.f32.mrf.mxu0
    %v425 = vadd.f32 %v291, %v424
    %v426 = vpop.f32.mrf.mxu0
    %v427 = vadd.f32 %v291, %v426
    %428 = vmatprep.mubr.f32.mxu0 0.0
    %429 = vmatmul.mubr.f32.gmra.mxu0 %v323
    %v430 = vpop.f32.mrf.mxu0
    %v431 = vadd.f32 %v296, %v430
    %v432 = vpop.f32.mrf.mxu0
    %v433 = vadd.f32 %v296, %v432
    %434 = vmatprep.mubr.f32.mxu0 0.0
    %435 = vmatmul.mubr.f32.gmra.mxu0 %v326
    %v436 = vpop.f32.mrf.mxu0
    %v437 = vadd.f32 %v301, %v436
    %v438 = vpop.f32.mrf.mxu0
    %v439 = vadd.f32 %v301, %v438
    %440 = vdwg.mxu0
    %v441 = vmax.f32 %v395, 0.0
    %v442 = vmax.f32 %v397, 0.0
    %v443 = vmax.f32 %v401, 0.0
    %v444 = vmax.f32 %v403, 0.0
    %v445 = vmax.f32 %v407, 0.0
    %v446 = vmax.f32 %v409, 0.0
    %v447 = vmax.f32 %v413, 0.0
    %v448 = vmax.f32 %v415, 0.0
    %v449 = vmax.f32 %v419, 0.0
    %v450 = vmax.f32 %v421, 0.0
    %v451 = vmax.f32 %v425, 0.0
    %v452 = vmax.f32 %v427, 0.0
    %v453 = vmax.f32 %v431, 0.0
    %v454 = vmax.f32 %v433, 0.0
    %v455 = vmax.f32 %v437, 0.0
    %v456 = vmax.f32 %v439, 0.0
    %v457 = vld [vmem:[%s6] sm:$0xff]
    %v458 = vld [vmem:[%s6 + $0x8] sm:$0xff]
    %v459 = vld [vmem:[%s7] sm:$0xff]
    %v460 = vld [vmem:[%s7 + $0x8] sm:$0xff]
    %462 = vset.pattern.permute.xlu0 0
    %463 = vperm.xlu0 %462, %v459
    %v464 = vpop.permute.xlu0 %463
    %467 = vset.pattern.permute.xlu0 0
    %468 = vperm.xlu0 %467, %v460
    %v469 = vpop.permute.xlu0 %468
    %v472 = vsel %vm303, %v457, 0
    %v475 = vsel %vm303, %v458, 0
    %477 = vmatprep.subr.mxu0 0.0
    %478 = vmatpush1.msra.mxu0 0.0
    %479 = vmatprep.subr.mxu0 0.0
    %480 = vmatpush1.msra.mxu0 0.0
    %481 = vmatprep.subr.mxu0 0.0
    %482 = vmatpush1.msra.mxu0 0.0
    %483 = vmatprep.subr.mxu0 0.0
    %484 = vmatpush1.msra.mxu0 0.0
    %485 = vmatprep.subr.mxu0 0.0
    %486 = vmatpush1.msra.mxu0 0.0
    %487 = vmatprep.subr.mxu0 0.0
    %488 = vmatpush1.msra.mxu0 0.0
    %489 = vmatprep.subr.mxu0 0.0
    %490 = vmatpush1.msra.mxu0 0.0
    %491 = vmatprep.subr.mxu0 0.0
    %492 = vmatpush1.msra.mxu0 0.0
    %493 = vmatprep.subr.mxu0 %v456
    %494 = vmatpush1.msra.mxu0 %v455
    %495 = vmatprep.subr.mxu0 %v454
    %496 = vmatpush1.msra.mxu0 %v453
    %497 = vmatprep.subr.mxu0 %v452
    %498 = vmatpush1.msra.mxu0 %v451
    %499 = vmatprep.subr.mxu0 %v450
    %500 = vmatpush1.msra.mxu0 %v449
    %501 = vmatprep.subr.mxu0 %v448
    %502 = vmatpush1.msra.mxu0 %v447
    %503 = vmatprep.subr.mxu0 %v446
    %504 = vmatpush1.msra.mxu0 %v445
    %505 = vmatprep.subr.mxu0 %v444
    %506 = vmatpush1.msra.mxu0 %v443
    %507 = vmatprep.subr.mxu0 %v442
    %508 = vmatpush1.msra.mxu0 %v441
    %509 = vmatprep.subr.mxu0 0.0
    %510 = vmatpush2.msra.mxu0 0.0
    %511 = vmatprep.subr.mxu0 0.0
    %512 = vmatpush2.msra.mxu0 0.0
    %513 = vmatprep.subr.mxu0 0.0
    %514 = vmatpush2.msra.mxu0 0.0
    %515 = vmatprep.subr.mxu0 0.0
    %516 = vmatpush2.msra.mxu0 0.0
    %517 = vmatprep.subr.mxu0 0.0
    %518 = vmatpush2.msra.mxu0 0.0
    %519 = vmatprep.subr.mxu0 0.0
    %520 = vmatpush2.msra.mxu0 0.0
    %521 = vmatprep.subr.mxu0 0.0
    %522 = vmatpush2.msra.mxu0 0.0
    %523 = vmatprep.subr.mxu0 0.0
    %524 = vmatpush2.msra.mxu0 0.0
    %525 = vmatprep.subr.mxu0 0.0
    %526 = vmatpush2.msra.mxu0 0.0
    %527 = vmatprep.subr.mxu0 0.0
    %528 = vmatpush2.msra.mxu0 0.0
    %529 = vmatprep.subr.mxu0 0.0
    %530 = vmatpush2.msra.mxu0 0.0
    %531 = vmatprep.subr.mxu0 0.0
    %532 = vmatpush2.msra.mxu0 0.0
    %533 = vmatprep.subr.mxu0 0.0
    %534 = vmatpush2.msra.mxu0 0.0
    %535 = vmatprep.subr.mxu0 0.0
    %536 = vmatpush2.msra.mxu0 0.0
    %537 = vmatprep.subr.mxu0 0.0
    %538 = vmatpush2.msra.mxu0 0.0
    %539 = vmatprep.subr.mxu0 0.0
    %540 = vmatpush2.msra.mxu0 0.0
    %541 = vmatprep.mubr.f32.mxu0 0.0
    %542 = vmatmul.mubr.f32.gmra.mxu0 %v472
    %v543 = vpop.f32.mrf.mxu0
    %v544 = vadd.f32 %v464, %v543
    %v545 = vpop.f32.mrf.mxu0
    %v546 = vadd.f32 %v464, %v545
    %547 = vmatprep.mubr.f32.mxu0 0.0
    %548 = vmatmul.mubr.f32.gmra.mxu0 %v475
    %v549 = vpop.f32.mrf.mxu0
    %v550 = vadd.f32 %v469, %v549
    %v551 = vpop.f32.mrf.mxu0
    %v552 = vadd.f32 %v469, %v551
    %553 = vdwg.mxu0
    %v554 = vtanh.pop %v544
    %v555 = vtanh.pop %v546
    %v556 = vmul.f32 %v554, 1.442695
    %v557 = vpow.pop %v556
    %v558 = vmul.f32 %v555, 1.442695
    %v559 = vpow.pop %v558
    %561 = vset.pattern.permute.xlu0 0
    %562 = vperm.xlu0 %561, %v36
    %v563 = vpop.permute.xlu0 %562
    %v565 = vmul.f32 %v563, %v557
    %v566 = vmul.f32 %v563, %v559
    %568 = vset.pattern.permute.xlu0 0
    %569 = vperm.xlu0 %568, %v35
    %v570 = vpop.permute.xlu0 %569
    %v572 = vadd.f32 %v570, %v565
    %v573 = vadd.f32 %v570, %v566
    %v574 = vmul.f32 %v33, %v572
    %v575 = vmul.f32 %v34, %v573
    %v576 = vadd.f32 %v574, %v550
    %v577 = vadd.f32 %v575, %v552
    %v578 = vrot.slane %v554, 4
    %v579 = vadd.f32 %v554, %v578
    %v580 = vrot.slane %v579, 2
    %v581 = vadd.f32 %v579, %v580
    %v582 = vrot.slane %v581, 1
    %v583 = vadd.f32 %v581, %v582
    %v584 = vrot.slane %v555, 4
    %v585 = vadd.f32 %v555, %v584
    %v586 = vrot.slane %v585, 2
    %v587 = vadd.f32 %v585, %v586
    %v588 = vrot.slane %v587, 1
    %v589 = vadd.f32 %v587, %v588
    %v590 = vadd.f32 %v583, 0.0
    %v591 = vadd.f32 %v589, 0.0
    %s592 = scalar_lea.vmem %s1, 8
    %v593 = vld [vmem:[%s592] sm:$0xff]
    %v594 = vsub.f32 1.0, %v593
    %s595 = scalar_lea.vmem %s2, 64
    %v596 = vld [vmem:[%s595] sm:$0xff]
    %v597 = vld [vmem:[%s595 + $0x8] sm:$0xff]
    %v598 = vld [vmem:[%s595 + $0x10] sm:$0xff]
    %v599 = vld [vmem:[%s595 + $0x18] sm:$0xff]
    %v600 = vld [vmem:[%s595 + $0x20] sm:$0xff]
    %v601 = vld [vmem:[%s595 + $0x28] sm:$0xff]
    %v602 = vld [vmem:[%s595 + $0x30] sm:$0xff]
    %v603 = vld [vmem:[%s595 + $0x38] sm:$0xff]
    %s604 = scalar_lea.vmem %s3, 64
    %v605 = vld [vmem:[%s604] sm:$0xff]
    %v606 = vld [vmem:[%s604 + $0x8] sm:$0xff]
    %v607 = vld [vmem:[%s604 + $0x10] sm:$0xff]
    %v608 = vld [vmem:[%s604 + $0x18] sm:$0xff]
    %v609 = vld [vmem:[%s604 + $0x20] sm:$0xff]
    %v610 = vld [vmem:[%s604 + $0x28] sm:$0xff]
    %v611 = vld [vmem:[%s604 + $0x30] sm:$0xff]
    %v612 = vld [vmem:[%s604 + $0x38] sm:$0xff]
    %614 = vset.pattern.permute.xlu0 0
    %615 = vperm.xlu0 %614, %v605
    %v616 = vpop.permute.xlu0 %615
    %619 = vset.pattern.permute.xlu0 0
    %620 = vperm.xlu0 %619, %v606
    %v621 = vpop.permute.xlu0 %620
    %624 = vset.pattern.permute.xlu0 0
    %625 = vperm.xlu0 %624, %v607
    %v626 = vpop.permute.xlu0 %625
    %629 = vset.pattern.permute.xlu0 0
    %630 = vperm.xlu0 %629, %v608
    %v631 = vpop.permute.xlu0 %630
    %634 = vset.pattern.permute.xlu0 0
    %635 = vperm.xlu0 %634, %v609
    %v636 = vpop.permute.xlu0 %635
    %639 = vset.pattern.permute.xlu0 0
    %640 = vperm.xlu0 %639, %v610
    %v641 = vpop.permute.xlu0 %640
    %644 = vset.pattern.permute.xlu0 0
    %645 = vperm.xlu0 %644, %v611
    %v646 = vpop.permute.xlu0 %645
    %649 = vset.pattern.permute.xlu0 0
    %650 = vperm.xlu0 %649, %v612
    %v651 = vpop.permute.xlu0 %650
    %v654 = vsel %vm93, %v596, 0
    %v657 = vsel %vm93, %v597, 0
    %v660 = vsel %vm93, %v598, 0
    %v663 = vsel %vm93, %v599, 0
    %v666 = vsel %vm93, %v600, 0
    %v669 = vsel %vm93, %v601, 0
    %v672 = vsel %vm93, %v602, 0
    %v675 = vsel %vm93, %v603, 0
    %677 = vmatprep.subr.mxu0 0.0
    %678 = vmatpush1.msra.mxu0 0.0
    %679 = vmatprep.subr.mxu0 0.0
    %680 = vmatpush1.msra.mxu0 0.0
    %681 = vmatprep.subr.mxu0 0.0
    %682 = vmatpush1.msra.mxu0 0.0
    %683 = vmatprep.subr.mxu0 0.0
    %684 = vmatpush1.msra.mxu0 0.0
    %685 = vmatprep.subr.mxu0 0.0
    %686 = vmatpush1.msra.mxu0 0.0
    %687 = vmatprep.subr.mxu0 0.0
    %688 = vmatpush1.msra.mxu0 0.0
    %689 = vmatprep.subr.mxu0 0.0
    %690 = vmatpush1.msra.mxu0 0.0
    %691 = vmatprep.subr.mxu0 0.0
    %692 = vmatpush1.msra.mxu0 0.0
    %693 = vmatprep.subr.mxu0 0.0
    %694 = vmatpush1.msra.mxu0 0.0
    %695 = vmatprep.subr.mxu0 0.0
    %696 = vmatpush1.msra.mxu0 0.0
    %697 = vmatprep.subr.mxu0 0.0
    %698 = vmatpush1.msra.mxu0 0.0
    %699 = vmatprep.subr.mxu0 0.0
    %700 = vmatpush1.msra.mxu0 0.0
    %701 = vmatprep.subr.mxu0 0.0
    %702 = vmatpush1.msra.mxu0 0.0
    %703 = vmatprep.subr.mxu0 0.0
    %704 = vmatpush1.msra.mxu0 0.0
    %705 = vmatprep.subr.mxu0 0.0
    %706 = vmatpush1.msra.mxu0 0.0
    %707 = vmatprep.subr.mxu0 %v577
    %708 = vmatpush1.msra.mxu0 %v576
    %709 = vmatprep.subr.mxu0 0.0
    %710 = vmatpush2.msra.mxu0 0.0
    %711 = vmatprep.subr.mxu0 0.0
    %712 = vmatpush2.msra.mxu0 0.0
    %713 = vmatprep.subr.mxu0 0.0
    %714 = vmatpush2.msra.mxu0 0.0
    %715 = vmatprep.subr.mxu0 0.0
    %716 = vmatpush2.msra.mxu0 0.0
    %717 = vmatprep.subr.mxu0 0.0
    %718 = vmatpush2.msra.mxu0 0.0
    %719 = vmatprep.subr.mxu0 0.0
    %720 = vmatpush2.msra.mxu0 0.0
    %721 = vmatprep.subr.mxu0 0.0
    %722 = vmatpush2.msra.mxu0 0.0
    %723 = vmatprep.subr.mxu0 0.0
    %724 = vmatpush2.msra.mxu0 0.0
    %725 = vmatprep.subr.mxu0 0.0
    %726 = vmatpush2.msra.mxu0 0.0
    %727 = vmatprep.subr.mxu0 0.0
    %728 = vmatpush2.msra.mxu0 0.0
    %729 = vmatprep.subr.mxu0 0.0
    %730 = vmatpush2.msra.mxu0 0.0
    %731 = vmatprep.subr.mxu0 0.0
    %732 = vmatpush2.msra.mxu0 0.0
    %733 = vmatprep.subr.mxu0 0.0
    %734 = vmatpush2.msra.mxu0 0.0
    %735 = vmatprep.subr.mxu0 0.0
    %736 = vmatpush2.msra.mxu0 0.0
    %737 = vmatprep.subr.mxu0 0.0
    %738 = vmatpush2.msra.mxu0 0.0
    %739 = vmatprep.subr.mxu0 0.0
    %740 = vmatpush2.msra.mxu0 0.0
    %741 = vmatprep.mubr.f32.mxu0 0.0
    %742 = vmatmul.mubr.f32.gmra.mxu0 %v654
    %v743 = vpop.f32.mrf.mxu0
    %v744 = vadd.f32 %v616, %v743
    %v745 = vpop.f32.mrf.mxu0
    %v746 = vadd.f32 %v616, %v745
    %747 = vmatprep.mubr.f32.mxu0 0.0
    %748 = vmatmul.mubr.f32.gmra.mxu0 %v657
    %v749 = vpop.f32.mrf.mxu0
    %v750 = vadd.f32 %v621, %v749
    %v751 = vpop.f32.mrf.mxu0
    %v752 = vadd.f32 %v621, %v751
    %753 = vmatprep.mubr.f32.mxu0 0.0
    %754 = vmatmul.mubr.f32.gmra.mxu0 %v660
    %v755 = vpop.f32.mrf.mxu0
    %v756 = vadd.f32 %v626, %v755
    %v757 = vpop.f32.mrf.mxu0
    %v758 = vadd.f32 %v626, %v757
    %759 = vmatprep.mubr.f32.mxu0 0.0
    %760 = vmatmul.mubr.f32.gmra.mxu0 %v663
    %v761 = vpop.f32.mrf.mxu0
    %v762 = vadd.f32 %v631, %v761
    %v763 = vpop.f32.mrf.mxu0
    %v764 = vadd.f32 %v631, %v763
    %765 = vmatprep.mubr.f32.mxu0 0.0
    %766 = vmatmul.mubr.f32.gmra.mxu0 %v666
    %v767 = vpop.f32.mrf.mxu0
    %v768 = vadd.f32 %v636, %v767
    %v769 = vpop.f32.mrf.mxu0
    %v770 = vadd.f32 %v636, %v769
    %771 = vmatprep.mubr.f32.mxu0 0.0
    %772 = vmatmul.mubr.f32.gmra.mxu0 %v669
    %v773 = vpop.f32.mrf.mxu0
    %v774 = vadd.f32 %v641, %v773
    %v775 = vpop.f32.mrf.mxu0
    %v776 = vadd.f32 %v641, %v775
    %777 = vmatprep.mubr.f32.mxu0 0.0
    %778 = vmatmul.mubr.f32.gmra.mxu0 %v672
    %v779 = vpop.f32.mrf.mxu0
    %v780 = vadd.f32 %v646, %v779
    %v781 = vpop.f32.mrf.mxu0
    %v782 = vadd.f32 %v646, %v781
    %783 = vmatprep.mubr.f32.mxu0 0.0
    %784 = vmatmul.mubr.f32.gmra.mxu0 %v675
    %v785 = vpop.f32.mrf.mxu0
    %v786 = vadd.f32 %v651, %v785
    %v787 = vpop.f32.mrf.mxu0
    %v788 = vadd.f32 %v651, %v787
    %789 = vdwg.mxu0
    %v790 = vmax.f32 %v744, 0.0
    %v791 = vmax.f32 %v746, 0.0
    %v792 = vmax.f32 %v750, 0.0
    %v793 = vmax.f32 %v752, 0.0
    %v794 = vmax.f32 %v756, 0.0
    %v795 = vmax.f32 %v758, 0.0
    %v796 = vmax.f32 %v762, 0.0
    %v797 = vmax.f32 %v764, 0.0
    %v798 = vmax.f32 %v768, 0.0
    %v799 = vmax.f32 %v770, 0.0
    %v800 = vmax.f32 %v774, 0.0
    %v801 = vmax.f32 %v776, 0.0
    %v802 = vmax.f32 %v780, 0.0
    %v803 = vmax.f32 %v782, 0.0
    %v804 = vmax.f32 %v786, 0.0
    %v805 = vmax.f32 %v788, 0.0
    %s806 = scalar_lea.vmem %s4, 64
    %v807 = vld [vmem:[%s806] sm:$0xff]
    %v808 = vld [vmem:[%s806 + $0x8] sm:$0xff]
    %v809 = vld [vmem:[%s806 + $0x10] sm:$0xff]
    %v810 = vld [vmem:[%s806 + $0x18] sm:$0xff]
    %v811 = vld [vmem:[%s806 + $0x20] sm:$0xff]
    %v812 = vld [vmem:[%s806 + $0x28] sm:$0xff]
    %v813 = vld [vmem:[%s806 + $0x30] sm:$0xff]
    %v814 = vld [vmem:[%s806 + $0x38] sm:$0xff]
    %s815 = scalar_lea.vmem %s5, 64
    %v816 = vld [vmem:[%s815] sm:$0xff]
    %v817 = vld [vmem:[%s815 + $0x8] sm:$0xff]
    %v818 = vld [vmem:[%s815 + $0x10] sm:$0xff]
    %v819 = vld [vmem:[%s815 + $0x18] sm:$0xff]
    %v820 = vld [vmem:[%s815 + $0x20] sm:$0xff]
    %v821 = vld [vmem:[%s815 + $0x28] sm:$0xff]
    %v822 = vld [vmem:[%s815 + $0x30] sm:$0xff]
    %v823 = vld [vmem:[%s815 + $0x38] sm:$0xff]
    %825 = vset.pattern.permute.xlu0 0
    %826 = vperm.xlu0 %825, %v816
    %v827 = vpop.permute.xlu0 %826
    %830 = vset.pattern.permute.xlu0 0
    %831 = vperm.xlu0 %830, %v817
    %v832 = vpop.permute.xlu0 %831
    %835 = vset.pattern.permute.xlu0 0
    %836 = vperm.xlu0 %835, %v818
    %v837 = vpop.permute.xlu0 %836
    %840 = vset.pattern.permute.xlu0 0
    %841 = vperm.xlu0 %840, %v819
    %v842 = vpop.permute.xlu0 %841
    %845 = vset.pattern.permute.xlu0 0
    %846 = vperm.xlu0 %845, %v820
    %v847 = vpop.permute.xlu0 %846
    %850 = vset.pattern.permute.xlu0 0
    %851 = vperm.xlu0 %850, %v821
    %v852 = vpop.permute.xlu0 %851
    %855 = vset.pattern.permute.xlu0 0
    %856 = vperm.xlu0 %855, %v822
    %v857 = vpop.permute.xlu0 %856
    %860 = vset.pattern.permute.xlu0 0
    %861 = vperm.xlu0 %860, %v823
    %v862 = vpop.permute.xlu0 %861
    %v865 = vsel %vm303, %v807, 0
    %v868 = vsel %vm303, %v808, 0
    %v871 = vsel %vm303, %v809, 0
    %v874 = vsel %vm303, %v810, 0
    %v877 = vsel %vm303, %v811, 0
    %v880 = vsel %vm303, %v812, 0
    %v883 = vsel %vm303, %v813, 0
    %v886 = vsel %vm303, %v814, 0
    %888 = vmatprep.subr.mxu0 0.0
    %889 = vmatpush1.msra.mxu0 0.0
    %890 = vmatprep.subr.mxu0 0.0
    %891 = vmatpush1.msra.mxu0 0.0
    %892 = vmatprep.subr.mxu0 0.0
    %893 = vmatpush1.msra.mxu0 0.0
    %894 = vmatprep.subr.mxu0 0.0
    %895 = vmatpush1.msra.mxu0 0.0
    %896 = vmatprep.subr.mxu0 0.0
    %897 = vmatpush1.msra.mxu0 0.0
    %898 = vmatprep.subr.mxu0 0.0
    %899 = vmatpush1.msra.mxu0 0.0
    %900 = vmatprep.subr.mxu0 0.0
    %901 = vmatpush1.msra.mxu0 0.0
    %902 = vmatprep.subr.mxu0 0.0
    %903 = vmatpush1.msra.mxu0 0.0
    %904 = vmatprep.subr.mxu0 %v805
    %905 = vmatpush1.msra.mxu0 %v804
    %906 = vmatprep.subr.mxu0 %v803
    %907 = vmatpush1.msra.mxu0 %v802
    %908 = vmatprep.subr.mxu0 %v801
    %909 = vmatpush1.msra.mxu0 %v800
    %910 = vmatprep.subr.mxu0 %v799
    %911 = vmatpush1.msra.mxu0 %v798
    %912 = vmatprep.subr.mxu0 %v797
    %913 = vmatpush1.msra.mxu0 %v796
    %914 = vmatprep.subr.mxu0 %v795
    %915 = vmatpush1.msra.mxu0 %v794
    %916 = vmatprep.subr.mxu0 %v793
    %917 = vmatpush1.msra.mxu0 %v792
    %918 = vmatprep.subr.mxu0 %v791
    %919 = vmatpush1.msra.mxu0 %v790
    %920 = vmatprep.subr.mxu0 0.0
    %921 = vmatpush2.msra.mxu0 0.0
    %922 = vmatprep.subr.mxu0 0.0
    %923 = vmatpush2.msra.mxu0 0.0
    %924 = vmatprep.subr.mxu0 0.0
    %925 = vmatpush2.msra.mxu0 0.0
    %926 = vmatprep.subr.mxu0 0.0
    %927 = vmatpush2.msra.mxu0 0.0
    %928 = vmatprep.subr.mxu0 0.0
    %929 = vmatpush2.msra.mxu0 0.0
    %930 = vmatprep.subr.mxu0 0.0
    %931 = vmatpush2.msra.mxu0 0.0
    %932 = vmatprep.subr.mxu0 0.0
    %933 = vmatpush2.msra.mxu0 0.0
    %934 = vmatprep.subr.mxu0 0.0
    %935 = vmatpush2.msra.mxu0 0.0
    %936 = vmatprep.subr.mxu0 0.0
    %937 = vmatpush2.msra.mxu0 0.0
    %938 = vmatprep.subr.mxu0 0.0
    %939 = vmatpush2.msra.mxu0 0.0
    %940 = vmatprep.subr.mxu0 0.0
    %941 = vmatpush2.msra.mxu0 0.0
    %942 = vmatprep.subr.mxu0 0.0
    %943 = vmatpush2.msra.mxu0 0.0
    %944 = vmatprep.subr.mxu0 0.0
    %945 = vmatpush2.msra.mxu0 0.0
    %946 = vmatprep.subr.mxu0 0.0
    %947 = vmatpush2.msra.mxu0 0.0
    %948 = vmatprep.subr.mxu0 0.0
    %949 = vmatpush2.msra.mxu0 0.0
    %950 = vmatprep.subr.mxu0 0.0
    %951 = vmatpush2.msra.mxu0 0.0
    %952 = vmatprep.mubr.f32.mxu0 0.0
    %953 = vmatmul.mubr.f32.gmra.mxu0 %v865
    %v954 = vpop.f32.mrf.mxu0
    %v955 = vadd.f32 %v827, %v954
    %v956 = vpop.f32.mrf.mxu0
    %v957 = vadd.f32 %v827, %v956
    %958 = vmatprep.mubr.f32.mxu0 0.0
    %959 = vmatmul.mubr.f32.gmra.mxu0 %v868
    %v960 = vpop.f32.mrf.mxu0
    %v961 = vadd.f32 %v832, %v960
    %v962 = vpop.f32.mrf.mxu0
    %v963 = vadd.f32 %v832, %v962
    %964 = vmatprep.mubr.f32.mxu0 0.0
    %965 = vmatmul.mubr.f32.gmra.mxu0 %v871
    %v966 = vpop.f32.mrf.mxu0
    %v967 = vadd.f32 %v837, %v966
    %v968 = vpop.f32.mrf.mxu0
    %v969 = vadd.f32 %v837, %v968
    %970 = vmatprep.mubr.f32.mxu0 0.0
    %971 = vmatmul.mubr.f32.gmra.mxu0 %v874
    %v972 = vpop.f32.mrf.mxu0
    %v973 = vadd.f32 %v842, %v972
    %v974 = vpop.f32.mrf.mxu0
    %v975 = vadd.f32 %v842, %v974
    %976 = vmatprep.mubr.f32.mxu0 0.0
    %977 = vmatmul.mubr.f32.gmra.mxu0 %v877
    %v978 = vpop.f32.mrf.mxu0
    %v979 = vadd.f32 %v847, %v978
    %v980 = vpop.f32.mrf.mxu0
    %v981 = vadd.f32 %v847, %v980
    %982 = vmatprep.mubr.f32.mxu0 0.0
    %983 = vmatmul.mubr.f32.gmra.mxu0 %v880
    %v984 = vpop.f32.mrf.mxu0
    %v985 = vadd.f32 %v852, %v984
    %v986 = vpop.f32.mrf.mxu0
    %v987 = vadd.f32 %v852, %v986
    %988 = vmatprep.mubr.f32.mxu0 0.0
    %989 = vmatmul.mubr.f32.gmra.mxu0 %v883
    %v990 = vpop.f32.mrf.mxu0
    %v991 = vadd.f32 %v857, %v990
    %v992 = vpop.f32.mrf.mxu0
    %v993 = vadd.f32 %v857, %v992
    %994 = vmatprep.mubr.f32.mxu0 0.0
    %995 = vmatmul.mubr.f32.gmra.mxu0 %v886
    %v996 = vpop.f32.mrf.mxu0
    %v997 = vadd.f32 %v862, %v996
    %v998 = vpop.f32.mrf.mxu0
    %v999 = vadd.f32 %v862, %v998
    %1000 = vdwg.mxu0
    %v1001 = vmax.f32 %v955, 0.0
    %v1002 = vmax.f32 %v957, 0.0
    %v1003 = vmax.f32 %v961, 0.0
    %v1004 = vmax.f32 %v963, 0.0
    %v1005 = vmax.f32 %v967, 0.0
    %v1006 = vmax.f32 %v969, 0.0
    %v1007 = vmax.f32 %v973, 0.0
    %v1008 = vmax.f32 %v975, 0.0
    %v1009 = vmax.f32 %v979, 0.0
    %v1010 = vmax.f32 %v981, 0.0
    %v1011 = vmax.f32 %v985, 0.0
    %v1012 = vmax.f32 %v987, 0.0
    %v1013 = vmax.f32 %v991, 0.0
    %v1014 = vmax.f32 %v993, 0.0
    %v1015 = vmax.f32 %v997, 0.0
    %v1016 = vmax.f32 %v999, 0.0
    %s1017 = scalar_lea.vmem %s6, 16
    %v1018 = vld [vmem:[%s1017] sm:$0xff]
    %v1019 = vld [vmem:[%s1017 + $0x8] sm:$0xff]
    %s1020 = scalar_lea.vmem %s7, 16
    %v1021 = vld [vmem:[%s1020] sm:$0xff]
    %v1022 = vld [vmem:[%s1020 + $0x8] sm:$0xff]
    %1024 = vset.pattern.permute.xlu0 0
    %1025 = vperm.xlu0 %1024, %v1021
    %v1026 = vpop.permute.xlu0 %1025
    %1029 = vset.pattern.permute.xlu0 0
    %1030 = vperm.xlu0 %1029, %v1022
    %v1031 = vpop.permute.xlu0 %1030
    %v1034 = vsel %vm303, %v1018, 0
    %v1037 = vsel %vm303, %v1019, 0
    %1039 = vmatprep.subr.mxu0 0.0
    %1040 = vmatpush1.msra.mxu0 0.0
    %1041 = vmatprep.subr.mxu0 0.0
    %1042 = vmatpush1.msra.mxu0 0.0
    %1043 = vmatprep.subr.mxu0 0.0
    %1044 = vmatpush1.msra.mxu0 0.0
    %1045 = vmatprep.subr.mxu0 0.0
    %1046 = vmatpush1.msra.mxu0 0.0
    %1047 = vmatprep.subr.mxu0 0.0
    %1048 = vmatpush1.msra.mxu0 0.0
    %1049 = vmatprep.subr.mxu0 0.0
    %1050 = vmatpush1.msra.mxu0 0.0
    %1051 = vmatprep.subr.mxu0 0.0
    %1052 = vmatpush1.msra.mxu0 0.0
    %1053 = vmatprep.subr.mxu0 0.0
    %1054 = vmatpush1.msra.mxu0 0.0
    %1055 = vmatprep.subr.mxu0 %v1016
    %1056 = vmatpush1.msra.mxu0 %v1015
    %1057 = vmatprep.subr.mxu0 %v1014
    %1058 = vmatpush1.msra.mxu0 %v1013
    %1059 = vmatprep.subr.mxu0 %v1012
    %1060 = vmatpush1.msra.mxu0 %v1011
    %1061 = vmatprep.subr.mxu0 %v1010
    %1062 = vmatpush1.msra.mxu0 %v1009
    %1063 = vmatprep.subr.mxu0 %v1008
    %1064 = vmatpush1.msra.mxu0 %v1007
    %1065 = vmatprep.subr.mxu0 %v1006
    %1066 = vmatpush1.msra.mxu0 %v1005
    %1067 = vmatprep.subr.mxu0 %v1004
    %1068 = vmatpush1.msra.mxu0 %v1003
    %1069 = vmatprep.subr.mxu0 %v1002
    %1070 = vmatpush1.msra.mxu0 %v1001
    %1071 = vmatprep.subr.mxu0 0.0
    %1072 = vmatpush2.msra.mxu0 0.0
    %1073 = vmatprep.subr.mxu0 0.0
    %1074 = vmatpush2.msra.mxu0 0.0
    %1075 = vmatprep.subr.mxu0 0.0
    %1076 = vmatpush2.msra.mxu0 0.0
    %1077 = vmatprep.subr.mxu0 0.0
    %1078 = vmatpush2.msra.mxu0 0.0
    %1079 = vmatprep.subr.mxu0 0.0
    %1080 = vmatpush2.msra.mxu0 0.0
    %1081 = vmatprep.subr.mxu0 0.0
    %1082 = vmatpush2.msra.mxu0 0.0
    %1083 = vmatprep.subr.mxu0 0.0
    %1084 = vmatpush2.msra.mxu0 0.0
    %1085 = vmatprep.subr.mxu0 0.0
    %1086 = vmatpush2.msra.mxu0 0.0
    %1087 = vmatprep.subr.mxu0 0.0
    %1088 = vmatpush2.msra.mxu0 0.0
    %1089 = vmatprep.subr.mxu0 0.0
    %1090 = vmatpush2.msra.mxu0 0.0
    %1091 = vmatprep.subr.mxu0 0.0
    %1092 = vmatpush2.msra.mxu0 0.0
    %1093 = vmatprep.subr.mxu0 0.0
    %1094 = vmatpush2.msra.mxu0 0.0
    %1095 = vmatprep.subr.mxu0 0.0
    %1096 = vmatpush2.msra.mxu0 0.0
    %1097 = vmatprep.subr.mxu0 0.0
    %1098 = vmatpush2.msra.mxu0 0.0
    %1099 = vmatprep.subr.mxu0 0.0
    %1100 = vmatpush2.msra.mxu0 0.0
    %1101 = vmatprep.subr.mxu0 0.0
    %1102 = vmatpush2.msra.mxu0 0.0
    %1103 = vmatprep.mubr.f32.mxu0 0.0
    %1104 = vmatmul.mubr.f32.gmra.mxu0 %v1034
    %v1105 = vpop.f32.mrf.mxu0
    %v1106 = vadd.f32 %v1026, %v1105
    %v1107 = vpop.f32.mrf.mxu0
    %v1108 = vadd.f32 %v1026, %v1107
    %1109 = vmatprep.mubr.f32.mxu0 0.0
    %1110 = vmatmul.mubr.f32.gmra.mxu0 %v1037
    %v1111 = vpop.f32.mrf.mxu0
    %v1112 = vadd.f32 %v1031, %v1111
    %v1113 = vpop.f32.mrf.mxu0
    %v1114 = vadd.f32 %v1031, %v1113
    %1115 = vdwg.mxu0
    %v1116 = vtanh.pop %v1106
    %v1117 = vtanh.pop %v1108
    %v1118 = vmul.f32 %v1116, 1.442695
    %v1119 = vpow.pop %v1118
    %v1120 = vmul.f32 %v1117, 1.442695
    %v1121 = vpow.pop %v1120
    %1123 = vset.pattern.permute.xlu0 0
    %1124 = vperm.xlu0 %1123, %v594
    %v1125 = vpop.permute.xlu0 %1124
    %v1127 = vmul.f32 %v1125, %v1119
    %v1128 = vmul.f32 %v1125, %v1121
    %1130 = vset.pattern.permute.xlu0 0
    %1131 = vperm.xlu0 %1130, %v593
    %v1132 = vpop.permute.xlu0 %1131
    %v1134 = vadd.f32 %v1132, %v1127
    %v1135 = vadd.f32 %v1132, %v1128
    %v1136 = vmul.f32 %v576, %v1134
    %v1137 = vmul.f32 %v577, %v1135
    %v1138 = vadd.f32 %v1136, %v1112
    %v1139 = vadd.f32 %v1137, %v1114
    %v1140 = vrot.slane %v1116, 4
    %v1141 = vadd.f32 %v1116, %v1140
    %v1142 = vrot.slane %v1141, 2
    %v1143 = vadd.f32 %v1141, %v1142
    %v1144 = vrot.slane %v1143, 1
    %v1145 = vadd.f32 %v1143, %v1144
    %v1146 = vrot.slane %v1117, 4
    %v1147 = vadd.f32 %v1117, %v1146
    %v1148 = vrot.slane %v1147, 2
    %v1149 = vadd.f32 %v1147, %v1148
    %v1150 = vrot.slane %v1149, 1
    %v1151 = vadd.f32 %v1149, %v1150
    %v1152 = vadd.f32 %v590, %v1145
    %v1153 = vadd.f32 %v591, %v1151
    %s1154 = scalar_lea.vmem %s1, 16
    %v1155 = vld [vmem:[%s1154] sm:$0xff]
    %v1156 = vsub.f32 1.0, %v1155
    %s1157 = scalar_lea.vmem %s2, 128
    %v1158 = vld [vmem:[%s1157] sm:$0xff]
    %v1159 = vld [vmem:[%s1157 + $0x8] sm:$0xff]
    %v1160 = vld [vmem:[%s1157 + $0x10] sm:$0xff]
    %v1161 = vld [vmem:[%s1157 + $0x18] sm:$0xff]
    %v1162 = vld [vmem:[%s1157 + $0x20] sm:$0xff]
    %v1163 = vld [vmem:[%s1157 + $0x28] sm:$0xff]
    %v1164 = vld [vmem:[%s1157 + $0x30] sm:$0xff]
    %v1165 = vld [vmem:[%s1157 + $0x38] sm:$0xff]
    %s1166 = scalar_lea.vmem %s3, 128
    %v1167 = vld [vmem:[%s1166] sm:$0xff]
    %v1168 = vld [vmem:[%s1166 + $0x8] sm:$0xff]
    %v1169 = vld [vmem:[%s1166 + $0x10] sm:$0xff]
    %v1170 = vld [vmem:[%s1166 + $0x18] sm:$0xff]
    %v1171 = vld [vmem:[%s1166 + $0x20] sm:$0xff]
    %v1172 = vld [vmem:[%s1166 + $0x28] sm:$0xff]
    %v1173 = vld [vmem:[%s1166 + $0x30] sm:$0xff]
    %v1174 = vld [vmem:[%s1166 + $0x38] sm:$0xff]
    %1176 = vset.pattern.permute.xlu0 0
    %1177 = vperm.xlu0 %1176, %v1167
    %v1178 = vpop.permute.xlu0 %1177
    %1181 = vset.pattern.permute.xlu0 0
    %1182 = vperm.xlu0 %1181, %v1168
    %v1183 = vpop.permute.xlu0 %1182
    %1186 = vset.pattern.permute.xlu0 0
    %1187 = vperm.xlu0 %1186, %v1169
    %v1188 = vpop.permute.xlu0 %1187
    %1191 = vset.pattern.permute.xlu0 0
    %1192 = vperm.xlu0 %1191, %v1170
    %v1193 = vpop.permute.xlu0 %1192
    %1196 = vset.pattern.permute.xlu0 0
    %1197 = vperm.xlu0 %1196, %v1171
    %v1198 = vpop.permute.xlu0 %1197
    %1201 = vset.pattern.permute.xlu0 0
    %1202 = vperm.xlu0 %1201, %v1172
    %v1203 = vpop.permute.xlu0 %1202
    %1206 = vset.pattern.permute.xlu0 0
    %1207 = vperm.xlu0 %1206, %v1173
    %v1208 = vpop.permute.xlu0 %1207
    %1211 = vset.pattern.permute.xlu0 0
    %1212 = vperm.xlu0 %1211, %v1174
    %v1213 = vpop.permute.xlu0 %1212
    %v1216 = vsel %vm93, %v1158, 0
    %v1219 = vsel %vm93, %v1159, 0
    %v1222 = vsel %vm93, %v1160, 0
    %v1225 = vsel %vm93, %v1161, 0
    %v1228 = vsel %vm93, %v1162, 0
    %v1231 = vsel %vm93, %v1163, 0
    %v1234 = vsel %vm93, %v1164, 0
    %v1237 = vsel %vm93, %v1165, 0
    %1239 = vmatprep.subr.mxu0 0.0
    %1240 = vmatpush1.msra.mxu0 0.0
    %1241 = vmatprep.subr.mxu0 0.0
    %1242 = vmatpush1.msra.mxu0 0.0
    %1243 = vmatprep.subr.mxu0 0.0
    %1244 = vmatpush1.msra.mxu0 0.0
    %1245 = vmatprep.subr.mxu0 0.0
    %1246 = vmatpush1.msra.mxu0 0.0
    %1247 = vmatprep.subr.mxu0 0.0
    %1248 = vmatpush1.msra.mxu0 0.0
    %1249 = vmatprep.subr.mxu0 0.0
    %1250 = vmatpush1.msra.mxu0 0.0
    %1251 = vmatprep.subr.mxu0 0.0
    %1252 = vmatpush1.msra.mxu0 0.0
    %1253 = vmatprep.subr.mxu0 0.0
    %1254 = vmatpush1.msra.mxu0 0.0
    %1255 = vmatprep.subr.mxu0 0.0
    %1256 = vmatpush1.msra.mxu0 0.0
    %1257 = vmatprep.subr.mxu0 0.0
    %1258 = vmatpush1.msra.mxu0 0.0
    %1259 = vmatprep.subr.mxu0 0.0
    %1260 = vmatpush1.msra.mxu0 0.0
    %1261 = vmatprep.subr.mxu0 0.0
    %1262 = vmatpush1.msra.mxu0 0.0
    %1263 = vmatprep.subr.mxu0 0.0
    %1264 = vmatpush1.msra.mxu0 0.0
    %1265 = vmatprep.subr.mxu0 0.0
    %1266 = vmatpush1.msra.mxu0 0.0
    %1267 = vmatprep.subr.mxu0 0.0
    %1268 = vmatpush1.msra.mxu0 0.0
    %1269 = vmatprep.subr.mxu0 %v1139
    %1270 = vmatpush1.msra.mxu0 %v1138
    %1271 = vmatprep.subr.mxu0 0.0
    %1272 = vmatpush2.msra.mxu0 0.0
    %1273 = vmatprep.subr.mxu0 0.0
    %1274 = vmatpush2.msra.mxu0 0.0
    %1275 = vmatprep.subr.mxu0 0.0
    %1276 = vmatpush2.msra.mxu0 0.0
    %1277 = vmatprep.subr.mxu0 0.0
    %1278 = vmatpush2.msra.mxu0 0.0
    %1279 = vmatprep.subr.mxu0 0.0
    %1280 = vmatpush2.msra.mxu0 0.0
    %1281 = vmatprep.subr.mxu0 0.0
    %1282 = vmatpush2.msra.mxu0 0.0
    %1283 = vmatprep.subr.mxu0 0.0
    %1284 = vmatpush2.msra.mxu0 0.0
    %1285 = vmatprep.subr.mxu0 0.0
    %1286 = vmatpush2.msra.mxu0 0.0
    %1287 = vmatprep.subr.mxu0 0.0
    %1288 = vmatpush2.msra.mxu0 0.0
    %1289 = vmatprep.subr.mxu0 0.0
    %1290 = vmatpush2.msra.mxu0 0.0
    %1291 = vmatprep.subr.mxu0 0.0
    %1292 = vmatpush2.msra.mxu0 0.0
    %1293 = vmatprep.subr.mxu0 0.0
    %1294 = vmatpush2.msra.mxu0 0.0
    %1295 = vmatprep.subr.mxu0 0.0
    %1296 = vmatpush2.msra.mxu0 0.0
    %1297 = vmatprep.subr.mxu0 0.0
    %1298 = vmatpush2.msra.mxu0 0.0
    %1299 = vmatprep.subr.mxu0 0.0
    %1300 = vmatpush2.msra.mxu0 0.0
    %1301 = vmatprep.subr.mxu0 0.0
    %1302 = vmatpush2.msra.mxu0 0.0
    %1303 = vmatprep.mubr.f32.mxu0 0.0
    %1304 = vmatmul.mubr.f32.gmra.mxu0 %v1216
    %v1305 = vpop.f32.mrf.mxu0
    %v1306 = vadd.f32 %v1178, %v1305
    %v1307 = vpop.f32.mrf.mxu0
    %v1308 = vadd.f32 %v1178, %v1307
    %1309 = vmatprep.mubr.f32.mxu0 0.0
    %1310 = vmatmul.mubr.f32.gmra.mxu0 %v1219
    %v1311 = vpop.f32.mrf.mxu0
    %v1312 = vadd.f32 %v1183, %v1311
    %v1313 = vpop.f32.mrf.mxu0
    %v1314 = vadd.f32 %v1183, %v1313
    %1315 = vmatprep.mubr.f32.mxu0 0.0
    %1316 = vmatmul.mubr.f32.gmra.mxu0 %v1222
    %v1317 = vpop.f32.mrf.mxu0
    %v1318 = vadd.f32 %v1188, %v1317
    %v1319 = vpop.f32.mrf.mxu0
    %v1320 = vadd.f32 %v1188, %v1319
    %1321 = vmatprep.mubr.f32.mxu0 0.0
    %1322 = vmatmul.mubr.f32.gmra.mxu0 %v1225
    %v1323 = vpop.f32.mrf.mxu0
    %v1324 = vadd.f32 %v1193, %v1323
    %v1325 = vpop.f32.mrf.mxu0
    %v1326 = vadd.f32 %v1193, %v1325
    %1327 = vmatprep.mubr.f32.mxu0 0.0
    %1328 = vmatmul.mubr.f32.gmra.mxu0 %v1228
    %v1329 = vpop.f32.mrf.mxu0
    %v1330 = vadd.f32 %v1198, %v1329
    %v1331 = vpop.f32.mrf.mxu0
    %v1332 = vadd.f32 %v1198, %v1331
    %1333 = vmatprep.mubr.f32.mxu0 0.0
    %1334 = vmatmul.mubr.f32.gmra.mxu0 %v1231
    %v1335 = vpop.f32.mrf.mxu0
    %v1336 = vadd.f32 %v1203, %v1335
    %v1337 = vpop.f32.mrf.mxu0
    %v1338 = vadd.f32 %v1203, %v1337
    %1339 = vmatprep.mubr.f32.mxu0 0.0
    %1340 = vmatmul.mubr.f32.gmra.mxu0 %v1234
    %v1341 = vpop.f32.mrf.mxu0
    %v1342 = vadd.f32 %v1208, %v1341
    %v1343 = vpop.f32.mrf.mxu0
    %v1344 = vadd.f32 %v1208, %v1343
    %1345 = vmatprep.mubr.f32.mxu0 0.0
    %1346 = vmatmul.mubr.f32.gmra.mxu0 %v1237
    %v1347 = vpop.f32.mrf.mxu0
    %v1348 = vadd.f32 %v1213, %v1347
    %v1349 = vpop.f32.mrf.mxu0
    %v1350 = vadd.f32 %v1213, %v1349
    %1351 = vdwg.mxu0
    %v1352 = vmax.f32 %v1306, 0.0
    %v1353 = vmax.f32 %v1308, 0.0
    %v1354 = vmax.f32 %v1312, 0.0
    %v1355 = vmax.f32 %v1314, 0.0
    %v1356 = vmax.f32 %v1318, 0.0
    %v1357 = vmax.f32 %v1320, 0.0
    %v1358 = vmax.f32 %v1324, 0.0
    %v1359 = vmax.f32 %v1326, 0.0
    %v1360 = vmax.f32 %v1330, 0.0
    %v1361 = vmax.f32 %v1332, 0.0
    %v1362 = vmax.f32 %v1336, 0.0
    %v1363 = vmax.f32 %v1338, 0.0
    %v1364 = vmax.f32 %v1342, 0.0
    %v1365 = vmax.f32 %v1344, 0.0
    %v1366 = vmax.f32 %v1348, 0.0
    %v1367 = vmax.f32 %v1350, 0.0
    %s1368 = scalar_lea.vmem %s4, 128
    %v1369 = vld [vmem:[%s1368] sm:$0xff]
    %v1370 = vld [vmem:[%s1368 + $0x8] sm:$0xff]
    %v1371 = vld [vmem:[%s1368 + $0x10] sm:$0xff]
    %v1372 = vld [vmem:[%s1368 + $0x18] sm:$0xff]
    %v1373 = vld [vmem:[%s1368 + $0x20] sm:$0xff]
    %v1374 = vld [vmem:[%s1368 + $0x28] sm:$0xff]
    %v1375 = vld [vmem:[%s1368 + $0x30] sm:$0xff]
    %v1376 = vld [vmem:[%s1368 + $0x38] sm:$0xff]
    %s1377 = scalar_lea.vmem %s5, 128
    %v1378 = vld [vmem:[%s1377] sm:$0xff]
    %v1379 = vld [vmem:[%s1377 + $0x8] sm:$0xff]
    %v1380 = vld [vmem:[%s1377 + $0x10] sm:$0xff]
    %v1381 = vld [vmem:[%s1377 + $0x18] sm:$0xff]
    %v1382 = vld [vmem:[%s1377 + $0x20] sm:$0xff]
    %v1383 = vld [vmem:[%s1377 + $0x28] sm:$0xff]
    %v1384 = vld [vmem:[%s1377 + $0x30] sm:$0xff]
    %v1385 = vld [vmem:[%s1377 + $0x38] sm:$0xff]
    %1387 = vset.pattern.permute.xlu0 0
    %1388 = vperm.xlu0 %1387, %v1378
    %v1389 = vpop.permute.xlu0 %1388
    %1392 = vset.pattern.permute.xlu0 0
    %1393 = vperm.xlu0 %1392, %v1379
    %v1394 = vpop.permute.xlu0 %1393
    %1397 = vset.pattern.permute.xlu0 0
    %1398 = vperm.xlu0 %1397, %v1380
    %v1399 = vpop.permute.xlu0 %1398
    %1402 = vset.pattern.permute.xlu0 0
    %1403 = vperm.xlu0 %1402, %v1381
    %v1404 = vpop.permute.xlu0 %1403
    %1407 = vset.pattern.permute.xlu0 0
    %1408 = vperm.xlu0 %1407, %v1382
    %v1409 = vpop.permute.xlu0 %1408
    %1412 = vset.pattern.permute.xlu0 0
    %1413 = vperm.xlu0 %1412, %v1383
    %v1414 = vpop.permute.xlu0 %1413
    %1417 = vset.pattern.permute.xlu0 0
    %1418 = vperm.xlu0 %1417, %v1384
    %v1419 = vpop.permute.xlu0 %1418
    %1422 = vset.pattern.permute.xlu0 0
    %1423 = vperm.xlu0 %1422, %v1385
    %v1424 = vpop.permute.xlu0 %1423
    %v1427 = vsel %vm303, %v1369, 0
    %v1430 = vsel %vm303, %v1370, 0
    %v1433 = vsel %vm303, %v1371, 0
    %v1436 = vsel %vm303, %v1372, 0
    %v1439 = vsel %vm303, %v1373, 0
    %v1442 = vsel %vm303, %v1374, 0
    %v1445 = vsel %vm303, %v1375, 0
    %v1448 = vsel %vm303, %v1376, 0
    %1450 = vmatprep.subr.mxu0 0.0
    %1451 = vmatpush1.msra.mxu0 0.0
    %1452 = vmatprep.subr.mxu0 0.0
    %1453 = vmatpush1.msra.mxu0 0.0
    %1454 = vmatprep.subr.mxu0 0.0
    %1455 = vmatpush1.msra.mxu0 0.0
    %1456 = vmatprep.subr.mxu0 0.0
    %1457 = vmatpush1.msra.mxu0 0.0
    %1458 = vmatprep.subr.mxu0 0.0
    %1459 = vmatpush1.msra.mxu0 0.0
    %1460 = vmatprep.subr.mxu0 0.0
    %1461 = vmatpush1.msra.mxu0 0.0
    %1462 = vmatprep.subr.mxu0 0.0
    %1463 = vmatpush1.msra.mxu0 0.0
    %1464 = vmatprep.subr.mxu0 0.0
    %1465 = vmatpush1.msra.mxu0 0.0
    %1466 = vmatprep.subr.mxu0 %v1367
    %1467 = vmatpush1.msra.mxu0 %v1366
    %1468 = vmatprep.subr.mxu0 %v1365
    %1469 = vmatpush1.msra.mxu0 %v1364
    %1470 = vmatprep.subr.mxu0 %v1363
    %1471 = vmatpush1.msra.mxu0 %v1362
    %1472 = vmatprep.subr.mxu0 %v1361
    %1473 = vmatpush1.msra.mxu0 %v1360
    %1474 = vmatprep.subr.mxu0 %v1359
    %1475 = vmatpush1.msra.mxu0 %v1358
    %1476 = vmatprep.subr.mxu0 %v1357
    %1477 = vmatpush1.msra.mxu0 %v1356
    %1478 = vmatprep.subr.mxu0 %v1355
    %1479 = vmatpush1.msra.mxu0 %v1354
    %1480 = vmatprep.subr.mxu0 %v1353
    %1481 = vmatpush1.msra.mxu0 %v1352
    %1482 = vmatprep.subr.mxu0 0.0
    %1483 = vmatpush2.msra.mxu0 0.0
    %1484 = vmatprep.subr.mxu0 0.0
    %1485 = vmatpush2.msra.mxu0 0.0
    %1486 = vmatprep.subr.mxu0 0.0
    %1487 = vmatpush2.msra.mxu0 0.0
    %1488 = vmatprep.subr.mxu0 0.0
    %1489 = vmatpush2.msra.mxu0 0.0
    %1490 = vmatprep.subr.mxu0 0.0
    %1491 = vmatpush2.msra.mxu0 0.0
    %1492 = vmatprep.subr.mxu0 0.0
    %1493 = vmatpush2.msra.mxu0 0.0
    %1494 = vmatprep.subr.mxu0 0.0
    %1495 = vmatpush2.msra.mxu0 0.0
    %1496 = vmatprep.subr.mxu0 0.0
    %1497 = vmatpush2.msra.mxu0 0.0
    %1498 = vmatprep.subr.mxu0 0.0
    %1499 = vmatpush2.msra.mxu0 0.0
    %1500 = vmatprep.subr.mxu0 0.0
    %1501 = vmatpush2.msra.mxu0 0.0
    %1502 = vmatprep.subr.mxu0 0.0
    %1503 = vmatpush2.msra.mxu0 0.0
    %1504 = vmatprep.subr.mxu0 0.0
    %1505 = vmatpush2.msra.mxu0 0.0
    %1506 = vmatprep.subr.mxu0 0.0
    %1507 = vmatpush2.msra.mxu0 0.0
    %1508 = vmatprep.subr.mxu0 0.0
    %1509 = vmatpush2.msra.mxu0 0.0
    %1510 = vmatprep.subr.mxu0 0.0
    %1511 = vmatpush2.msra.mxu0 0.0
    %1512 = vmatprep.subr.mxu0 0.0
    %1513 = vmatpush2.msra.mxu0 0.0
    %1514 = vmatprep.mubr.f32.mxu0 0.0
    %1515 = vmatmul.mubr.f32.gmra.mxu0 %v1427
    %v1516 = vpop.f32.mrf.mxu0
    %v1517 = vadd.f32 %v1389, %v1516
    %v1518 = vpop.f32.mrf.mxu0
    %v1519 = vadd.f32 %v1389, %v1518
    %1520 = vmatprep.mubr.f32.mxu0 0.0
    %1521 = vmatmul.mubr.f32.gmra.mxu0 %v1430
    %v1522 = vpop.f32.mrf.mxu0
    %v1523 = vadd.f32 %v1394, %v1522
    %v1524 = vpop.f32.mrf.mxu0
    %v1525 = vadd.f32 %v1394, %v1524
    %1526 = vmatprep.mubr.f32.mxu0 0.0
    %1527 = vmatmul.mubr.f32.gmra.mxu0 %v1433
    %v1528 = vpop.f32.mrf.mxu0
    %v1529 = vadd.f32 %v1399, %v1528
    %v1530 = vpop.f32.mrf.mxu0
    %v1531 = vadd.f32 %v1399, %v1530
    %1532 = vmatprep.mubr.f32.mxu0 0.0
    %1533 = vmatmul.mubr.f32.gmra.mxu0 %v1436
    %v1534 = vpop.f32.mrf.mxu0
    %v1535 = vadd.f32 %v1404, %v1534
    %v1536 = vpop.f32.mrf.mxu0
    %v1537 = vadd.f32 %v1404, %v1536
    %1538 = vmatprep.mubr.f32.mxu0 0.0
    %1539 = vmatmul.mubr.f32.gmra.mxu0 %v1439
    %v1540 = vpop.f32.mrf.mxu0
    %v1541 = vadd.f32 %v1409, %v1540
    %v1542 = vpop.f32.mrf.mxu0
    %v1543 = vadd.f32 %v1409, %v1542
    %1544 = vmatprep.mubr.f32.mxu0 0.0
    %1545 = vmatmul.mubr.f32.gmra.mxu0 %v1442
    %v1546 = vpop.f32.mrf.mxu0
    %v1547 = vadd.f32 %v1414, %v1546
    %v1548 = vpop.f32.mrf.mxu0
    %v1549 = vadd.f32 %v1414, %v1548
    %1550 = vmatprep.mubr.f32.mxu0 0.0
    %1551 = vmatmul.mubr.f32.gmra.mxu0 %v1445
    %v1552 = vpop.f32.mrf.mxu0
    %v1553 = vadd.f32 %v1419, %v1552
    %v1554 = vpop.f32.mrf.mxu0
    %v1555 = vadd.f32 %v1419, %v1554
    %1556 = vmatprep.mubr.f32.mxu0 0.0
    %1557 = vmatmul.mubr.f32.gmra.mxu0 %v1448
    %v1558 = vpop.f32.mrf.mxu0
    %v1559 = vadd.f32 %v1424, %v1558
    %v1560 = vpop.f32.mrf.mxu0
    %v1561 = vadd.f32 %v1424, %v1560
    %1562 = vdwg.mxu0
    %v1563 = vmax.f32 %v1517, 0.0
    %v1564 = vmax.f32 %v1519, 0.0
    %v1565 = vmax.f32 %v1523, 0.0
    %v1566 = vmax.f32 %v1525, 0.0
    %v1567 = vmax.f32 %v1529, 0.0
    %v1568 = vmax.f32 %v1531, 0.0
    %v1569 = vmax.f32 %v1535, 0.0
    %v1570 = vmax.f32 %v1537, 0.0
    %v1571 = vmax.f32 %v1541, 0.0
    %v1572 = vmax.f32 %v1543, 0.0
    %v1573 = vmax.f32 %v1547, 0.0
    %v1574 = vmax.f32 %v1549, 0.0
    %v1575 = vmax.f32 %v1553, 0.0
    %v1576 = vmax.f32 %v1555, 0.0
    %v1577 = vmax.f32 %v1559, 0.0
    %v1578 = vmax.f32 %v1561, 0.0
    %s1579 = scalar_lea.vmem %s6, 32
    %v1580 = vld [vmem:[%s1579] sm:$0xff]
    %v1581 = vld [vmem:[%s1579 + $0x8] sm:$0xff]
    %s1582 = scalar_lea.vmem %s7, 32
    %v1583 = vld [vmem:[%s1582] sm:$0xff]
    %v1584 = vld [vmem:[%s1582 + $0x8] sm:$0xff]
    %1586 = vset.pattern.permute.xlu0 0
    %1587 = vperm.xlu0 %1586, %v1583
    %v1588 = vpop.permute.xlu0 %1587
    %1591 = vset.pattern.permute.xlu0 0
    %1592 = vperm.xlu0 %1591, %v1584
    %v1593 = vpop.permute.xlu0 %1592
    %v1596 = vsel %vm303, %v1580, 0
    %v1599 = vsel %vm303, %v1581, 0
    %1601 = vmatprep.subr.mxu0 0.0
    %1602 = vmatpush1.msra.mxu0 0.0
    %1603 = vmatprep.subr.mxu0 0.0
    %1604 = vmatpush1.msra.mxu0 0.0
    %1605 = vmatprep.subr.mxu0 0.0
    %1606 = vmatpush1.msra.mxu0 0.0
    %1607 = vmatprep.subr.mxu0 0.0
    %1608 = vmatpush1.msra.mxu0 0.0
    %1609 = vmatprep.subr.mxu0 0.0
    %1610 = vmatpush1.msra.mxu0 0.0
    %1611 = vmatprep.subr.mxu0 0.0
    %1612 = vmatpush1.msra.mxu0 0.0
    %1613 = vmatprep.subr.mxu0 0.0
    %1614 = vmatpush1.msra.mxu0 0.0
    %1615 = vmatprep.subr.mxu0 0.0
    %1616 = vmatpush1.msra.mxu0 0.0
    %1617 = vmatprep.subr.mxu0 %v1578
    %1618 = vmatpush1.msra.mxu0 %v1577
    %1619 = vmatprep.subr.mxu0 %v1576
    %1620 = vmatpush1.msra.mxu0 %v1575
    %1621 = vmatprep.subr.mxu0 %v1574
    %1622 = vmatpush1.msra.mxu0 %v1573
    %1623 = vmatprep.subr.mxu0 %v1572
    %1624 = vmatpush1.msra.mxu0 %v1571
    %1625 = vmatprep.subr.mxu0 %v1570
    %1626 = vmatpush1.msra.mxu0 %v1569
    %1627 = vmatprep.subr.mxu0 %v1568
    %1628 = vmatpush1.msra.mxu0 %v1567
    %1629 = vmatprep.subr.mxu0 %v1566
    %1630 = vmatpush1.msra.mxu0 %v1565
    %1631 = vmatprep.subr.mxu0 %v1564
    %1632 = vmatpush1.msra.mxu0 %v1563
    %1633 = vmatprep.subr.mxu0 0.0
    %1634 = vmatpush2.msra.mxu0 0.0
    %1635 = vmatprep.subr.mxu0 0.0
    %1636 = vmatpush2.msra.mxu0 0.0
    %1637 = vmatprep.subr.mxu0 0.0
    %1638 = vmatpush2.msra.mxu0 0.0
    %1639 = vmatprep.subr.mxu0 0.0
    %1640 = vmatpush2.msra.mxu0 0.0
    %1641 = vmatprep.subr.mxu0 0.0
    %1642 = vmatpush2.msra.mxu0 0.0
    %1643 = vmatprep.subr.mxu0 0.0
    %1644 = vmatpush2.msra.mxu0 0.0
    %1645 = vmatprep.subr.mxu0 0.0
    %1646 = vmatpush2.msra.mxu0 0.0
    %1647 = vmatprep.subr.mxu0 0.0
    %1648 = vmatpush2.msra.mxu0 0.0
    %1649 = vmatprep.subr.mxu0 0.0
    %1650 = vmatpush2.msra.mxu0 0.0
    %1651 = vmatprep.subr.mxu0 0.0
    %1652 = vmatpush2.msra.mxu0 0.0
    %1653 = vmatprep.subr.mxu0 0.0
    %1654 = vmatpush2.msra.mxu0 0.0
    %1655 = vmatprep.subr.mxu0 0.0
    %1656 = vmatpush2.msra.mxu0 0.0
    %1657 = vmatprep.subr.mxu0 0.0
    %1658 = vmatpush2.msra.mxu0 0.0
    %1659 = vmatprep.subr.mxu0 0.0
    %1660 = vmatpush2.msra.mxu0 0.0
    %1661 = vmatprep.subr.mxu0 0.0
    %1662 = vmatpush2.msra.mxu0 0.0
    %1663 = vmatprep.subr.mxu0 0.0
    %1664 = vmatpush2.msra.mxu0 0.0
    %1665 = vmatprep.mubr.f32.mxu0 0.0
    %1666 = vmatmul.mubr.f32.gmra.mxu0 %v1596
    %v1667 = vpop.f32.mrf.mxu0
    %v1668 = vadd.f32 %v1588, %v1667
    %v1669 = vpop.f32.mrf.mxu0
    %v1670 = vadd.f32 %v1588, %v1669
    %1671 = vmatprep.mubr.f32.mxu0 0.0
    %1672 = vmatmul.mubr.f32.gmra.mxu0 %v1599
    %v1673 = vpop.f32.mrf.mxu0
    %v1674 = vadd.f32 %v1593, %v1673
    %v1675 = vpop.f32.mrf.mxu0
    %v1676 = vadd.f32 %v1593, %v1675
    %1677 = vdwg.mxu0
    %v1678 = vtanh.pop %v1668
    %v1679 = vtanh.pop %v1670
    %v1680 = vmul.f32 %v1678, 1.442695
    %v1681 = vpow.pop %v1680
    %v1682 = vmul.f32 %v1679, 1.442695
    %v1683 = vpow.pop %v1682
    %1685 = vset.pattern.permute.xlu0 0
    %1686 = vperm.xlu0 %1685, %v1156
    %v1687 = vpop.permute.xlu0 %1686
    %v1689 = vmul.f32 %v1687, %v1681
    %v1690 = vmul.f32 %v1687, %v1683
    %1692 = vset.pattern.permute.xlu0 0
    %1693 = vperm.xlu0 %1692, %v1155
    %v1694 = vpop.permute.xlu0 %1693
    %v1696 = vadd.f32 %v1694, %v1689
    %v1697 = vadd.f32 %v1694, %v1690
    %v1698 = vmul.f32 %v1138, %v1696
    %v1699 = vmul.f32 %v1139, %v1697
    %v1700 = vadd.f32 %v1698, %v1674
    %v1701 = vadd.f32 %v1699, %v1676
    %v1702 = vrot.slane %v1678, 4
    %v1703 = vadd.f32 %v1678, %v1702
    %v1704 = vrot.slane %v1703, 2
    %v1705 = vadd.f32 %v1703, %v1704
    %v1706 = vrot.slane %v1705, 1
    %v1707 = vadd.f32 %v1705, %v1706
    %v1708 = vrot.slane %v1679, 4
    %v1709 = vadd.f32 %v1679, %v1708
    %v1710 = vrot.slane %v1709, 2
    %v1711 = vadd.f32 %v1709, %v1710
    %v1712 = vrot.slane %v1711, 1
    %v1713 = vadd.f32 %v1711, %v1712
    %v1714 = vadd.f32 %v1152, %v1707
    %v1715 = vadd.f32 %v1153, %v1713
    %s1716 = scalar_lea.vmem %s1, 24
    %v1717 = vld [vmem:[%s1716] sm:$0xff]
    %v1718 = vsub.f32 1.0, %v1717
    %s1719 = scalar_lea.vmem %s2, 192
    %v1720 = vld [vmem:[%s1719] sm:$0xff]
    %v1721 = vld [vmem:[%s1719 + $0x8] sm:$0xff]
    %v1722 = vld [vmem:[%s1719 + $0x10] sm:$0xff]
    %v1723 = vld [vmem:[%s1719 + $0x18] sm:$0xff]
    %v1724 = vld [vmem:[%s1719 + $0x20] sm:$0xff]
    %v1725 = vld [vmem:[%s1719 + $0x28] sm:$0xff]
    %v1726 = vld [vmem:[%s1719 + $0x30] sm:$0xff]
    %v1727 = vld [vmem:[%s1719 + $0x38] sm:$0xff]
    %s1728 = scalar_lea.vmem %s3, 192
    %v1729 = vld [vmem:[%s1728] sm:$0xff]
    %v1730 = vld [vmem:[%s1728 + $0x8] sm:$0xff]
    %v1731 = vld [vmem:[%s1728 + $0x10] sm:$0xff]
    %v1732 = vld [vmem:[%s1728 + $0x18] sm:$0xff]
    %v1733 = vld [vmem:[%s1728 + $0x20] sm:$0xff]
    %v1734 = vld [vmem:[%s1728 + $0x28] sm:$0xff]
    %v1735 = vld [vmem:[%s1728 + $0x30] sm:$0xff]
    %v1736 = vld [vmem:[%s1728 + $0x38] sm:$0xff]
    %1738 = vset.pattern.permute.xlu0 0
    %1739 = vperm.xlu0 %1738, %v1729
    %v1740 = vpop.permute.xlu0 %1739
    %1743 = vset.pattern.permute.xlu0 0
    %1744 = vperm.xlu0 %1743, %v1730
    %v1745 = vpop.permute.xlu0 %1744
    %1748 = vset.pattern.permute.xlu0 0
    %1749 = vperm.xlu0 %1748, %v1731
    %v1750 = vpop.permute.xlu0 %1749
    %1753 = vset.pattern.permute.xlu0 0
    %1754 = vperm.xlu0 %1753, %v1732
    %v1755 = vpop.permute.xlu0 %1754
    %1758 = vset.pattern.permute.xlu0 0
    %1759 = vperm.xlu0 %1758, %v1733
    %v1760 = vpop.permute.xlu0 %1759
    %1763 = vset.pattern.permute.xlu0 0
    %1764 = vperm.xlu0 %1763, %v1734
    %v1765 = vpop.permute.xlu0 %1764
    %1768 = vset.pattern.permute.xlu0 0
    %1769 = vperm.xlu0 %1768, %v1735
    %v1770 = vpop.permute.xlu0 %1769
    %1773 = vset.pattern.permute.xlu0 0
    %1774 = vperm.xlu0 %1773, %v1736
    %v1775 = vpop.permute.xlu0 %1774
    %v1778 = vsel %vm93, %v1720, 0
    %v1781 = vsel %vm93, %v1721, 0
    %v1784 = vsel %vm93, %v1722, 0
    %v1787 = vsel %vm93, %v1723, 0
    %v1790 = vsel %vm93, %v1724, 0
    %v1793 = vsel %vm93, %v1725, 0
    %v1796 = vsel %vm93, %v1726, 0
    %v1799 = vsel %vm93, %v1727, 0
    %1801 = vmatprep.subr.mxu0 0.0
    %1802 = vmatpush1.msra.mxu0 0.0
    %1803 = vmatprep.subr.mxu0 0.0
    %1804 = vmatpush1.msra.mxu0 0.0
    %1805 = vmatprep.subr.mxu0 0.0
    %1806 = vmatpush1.msra.mxu0 0.0
    %1807 = vmatprep.subr.mxu0 0.0
    %1808 = vmatpush1.msra.mxu0 0.0
    %1809 = vmatprep.subr.mxu0 0.0
    %1810 = vmatpush1.msra.mxu0 0.0
    %1811 = vmatprep.subr.mxu0 0.0
    %1812 = vmatpush1.msra.mxu0 0.0
    %1813 = vmatprep.subr.mxu0 0.0
    %1814 = vmatpush1.msra.mxu0 0.0
    %1815 = vmatprep.subr.mxu0 0.0
    %1816 = vmatpush1.msra.mxu0 0.0
    %1817 = vmatprep.subr.mxu0 0.0
    %1818 = vmatpush1.msra.mxu0 0.0
    %1819 = vmatprep.subr.mxu0 0.0
    %1820 = vmatpush1.msra.mxu0 0.0
    %1821 = vmatprep.subr.mxu0 0.0
    %1822 = vmatpush1.msra.mxu0 0.0
    %1823 = vmatprep.subr.mxu0 0.0
    %1824 = vmatpush1.msra.mxu0 0.0
    %1825 = vmatprep.subr.mxu0 0.0
    %1826 = vmatpush1.msra.mxu0 0.0
    %1827 = vmatprep.subr.mxu0 0.0
    %1828 = vmatpush1.msra.mxu0 0.0
    %1829 = vmatprep.subr.mxu0 0.0
    %1830 = vmatpush1.msra.mxu0 0.0
    %1831 = vmatprep.subr.mxu0 %v1701
    %1832 = vmatpush1.msra.mxu0 %v1700
    %1833 = vmatprep.subr.mxu0 0.0
    %1834 = vmatpush2.msra.mxu0 0.0
    %1835 = vmatprep.subr.mxu0 0.0
    %1836 = vmatpush2.msra.mxu0 0.0
    %1837 = vmatprep.subr.mxu0 0.0
    %1838 = vmatpush2.msra.mxu0 0.0
    %1839 = vmatprep.subr.mxu0 0.0
    %1840 = vmatpush2.msra.mxu0 0.0
    %1841 = vmatprep.subr.mxu0 0.0
    %1842 = vmatpush2.msra.mxu0 0.0
    %1843 = vmatprep.subr.mxu0 0.0
    %1844 = vmatpush2.msra.mxu0 0.0
    %1845 = vmatprep.subr.mxu0 0.0
    %1846 = vmatpush2.msra.mxu0 0.0
    %1847 = vmatprep.subr.mxu0 0.0
    %1848 = vmatpush2.msra.mxu0 0.0
    %1849 = vmatprep.subr.mxu0 0.0
    %1850 = vmatpush2.msra.mxu0 0.0
    %1851 = vmatprep.subr.mxu0 0.0
    %1852 = vmatpush2.msra.mxu0 0.0
    %1853 = vmatprep.subr.mxu0 0.0
    %1854 = vmatpush2.msra.mxu0 0.0
    %1855 = vmatprep.subr.mxu0 0.0
    %1856 = vmatpush2.msra.mxu0 0.0
    %1857 = vmatprep.subr.mxu0 0.0
    %1858 = vmatpush2.msra.mxu0 0.0
    %1859 = vmatprep.subr.mxu0 0.0
    %1860 = vmatpush2.msra.mxu0 0.0
    %1861 = vmatprep.subr.mxu0 0.0
    %1862 = vmatpush2.msra.mxu0 0.0
    %1863 = vmatprep.subr.mxu0 0.0
    %1864 = vmatpush2.msra.mxu0 0.0
    %1865 = vmatprep.mubr.f32.mxu0 0.0
    %1866 = vmatmul.mubr.f32.gmra.mxu0 %v1778
    %v1867 = vpop.f32.mrf.mxu0
    %v1868 = vadd.f32 %v1740, %v1867
    %v1869 = vpop.f32.mrf.mxu0
    %v1870 = vadd.f32 %v1740, %v1869
    %1871 = vmatprep.mubr.f32.mxu0 0.0
    %1872 = vmatmul.mubr.f32.gmra.mxu0 %v1781
    %v1873 = vpop.f32.mrf.mxu0
    %v1874 = vadd.f32 %v1745, %v1873
    %v1875 = vpop.f32.mrf.mxu0
    %v1876 = vadd.f32 %v1745, %v1875
    %1877 = vmatprep.mubr.f32.mxu0 0.0
    %1878 = vmatmul.mubr.f32.gmra.mxu0 %v1784
    %v1879 = vpop.f32.mrf.mxu0
    %v1880 = vadd.f32 %v1750, %v1879
    %v1881 = vpop.f32.mrf.mxu0
    %v1882 = vadd.f32 %v1750, %v1881
    %1883 = vmatprep.mubr.f32.mxu0 0.0
    %1884 = vmatmul.mubr.f32.gmra.mxu0 %v1787
    %v1885 = vpop.f32.mrf.mxu0
    %v1886 = vadd.f32 %v1755, %v1885
    %v1887 = vpop.f32.mrf.mxu0
    %v1888 = vadd.f32 %v1755, %v1887
    %1889 = vmatprep.mubr.f32.mxu0 0.0
    %1890 = vmatmul.mubr.f32.gmra.mxu0 %v1790
    %v1891 = vpop.f32.mrf.mxu0
    %v1892 = vadd.f32 %v1760, %v1891
    %v1893 = vpop.f32.mrf.mxu0
    %v1894 = vadd.f32 %v1760, %v1893
    %1895 = vmatprep.mubr.f32.mxu0 0.0
    %1896 = vmatmul.mubr.f32.gmra.mxu0 %v1793
    %v1897 = vpop.f32.mrf.mxu0
    %v1898 = vadd.f32 %v1765, %v1897
    %v1899 = vpop.f32.mrf.mxu0
    %v1900 = vadd.f32 %v1765, %v1899
    %1901 = vmatprep.mubr.f32.mxu0 0.0
    %1902 = vmatmul.mubr.f32.gmra.mxu0 %v1796
    %v1903 = vpop.f32.mrf.mxu0
    %v1904 = vadd.f32 %v1770, %v1903
    %v1905 = vpop.f32.mrf.mxu0
    %v1906 = vadd.f32 %v1770, %v1905
    %1907 = vmatprep.mubr.f32.mxu0 0.0
    %1908 = vmatmul.mubr.f32.gmra.mxu0 %v1799
    %v1909 = vpop.f32.mrf.mxu0
    %v1910 = vadd.f32 %v1775, %v1909
    %v1911 = vpop.f32.mrf.mxu0
    %v1912 = vadd.f32 %v1775, %v1911
    %1913 = vdwg.mxu0
    %v1914 = vmax.f32 %v1868, 0.0
    %v1915 = vmax.f32 %v1870, 0.0
    %v1916 = vmax.f32 %v1874, 0.0
    %v1917 = vmax.f32 %v1876, 0.0
    %v1918 = vmax.f32 %v1880, 0.0
    %v1919 = vmax.f32 %v1882, 0.0
    %v1920 = vmax.f32 %v1886, 0.0
    %v1921 = vmax.f32 %v1888, 0.0
    %v1922 = vmax.f32 %v1892, 0.0
    %v1923 = vmax.f32 %v1894, 0.0
    %v1924 = vmax.f32 %v1898, 0.0
    %v1925 = vmax.f32 %v1900, 0.0
    %v1926 = vmax.f32 %v1904, 0.0
    %v1927 = vmax.f32 %v1906, 0.0
    %v1928 = vmax.f32 %v1910, 0.0
    %v1929 = vmax.f32 %v1912, 0.0
    %s1930 = scalar_lea.vmem %s4, 192
    %v1931 = vld [vmem:[%s1930] sm:$0xff]
    %v1932 = vld [vmem:[%s1930 + $0x8] sm:$0xff]
    %v1933 = vld [vmem:[%s1930 + $0x10] sm:$0xff]
    %v1934 = vld [vmem:[%s1930 + $0x18] sm:$0xff]
    %v1935 = vld [vmem:[%s1930 + $0x20] sm:$0xff]
    %v1936 = vld [vmem:[%s1930 + $0x28] sm:$0xff]
    %v1937 = vld [vmem:[%s1930 + $0x30] sm:$0xff]
    %v1938 = vld [vmem:[%s1930 + $0x38] sm:$0xff]
    %s1939 = scalar_lea.vmem %s5, 192
    %v1940 = vld [vmem:[%s1939] sm:$0xff]
    %v1941 = vld [vmem:[%s1939 + $0x8] sm:$0xff]
    %v1942 = vld [vmem:[%s1939 + $0x10] sm:$0xff]
    %v1943 = vld [vmem:[%s1939 + $0x18] sm:$0xff]
    %v1944 = vld [vmem:[%s1939 + $0x20] sm:$0xff]
    %v1945 = vld [vmem:[%s1939 + $0x28] sm:$0xff]
    %v1946 = vld [vmem:[%s1939 + $0x30] sm:$0xff]
    %v1947 = vld [vmem:[%s1939 + $0x38] sm:$0xff]
    %1949 = vset.pattern.permute.xlu0 0
    %1950 = vperm.xlu0 %1949, %v1940
    %v1951 = vpop.permute.xlu0 %1950
    %1954 = vset.pattern.permute.xlu0 0
    %1955 = vperm.xlu0 %1954, %v1941
    %v1956 = vpop.permute.xlu0 %1955
    %1959 = vset.pattern.permute.xlu0 0
    %1960 = vperm.xlu0 %1959, %v1942
    %v1961 = vpop.permute.xlu0 %1960
    %1964 = vset.pattern.permute.xlu0 0
    %1965 = vperm.xlu0 %1964, %v1943
    %v1966 = vpop.permute.xlu0 %1965
    %1969 = vset.pattern.permute.xlu0 0
    %1970 = vperm.xlu0 %1969, %v1944
    %v1971 = vpop.permute.xlu0 %1970
    %1974 = vset.pattern.permute.xlu0 0
    %1975 = vperm.xlu0 %1974, %v1945
    %v1976 = vpop.permute.xlu0 %1975
    %1979 = vset.pattern.permute.xlu0 0
    %1980 = vperm.xlu0 %1979, %v1946
    %v1981 = vpop.permute.xlu0 %1980
    %1984 = vset.pattern.permute.xlu0 0
    %1985 = vperm.xlu0 %1984, %v1947
    %v1986 = vpop.permute.xlu0 %1985
    %v1989 = vsel %vm303, %v1931, 0
    %v1992 = vsel %vm303, %v1932, 0
    %v1995 = vsel %vm303, %v1933, 0
    %v1998 = vsel %vm303, %v1934, 0
    %v2001 = vsel %vm303, %v1935, 0
    %v2004 = vsel %vm303, %v1936, 0
    %v2007 = vsel %vm303, %v1937, 0
    %v2010 = vsel %vm303, %v1938, 0
    %2012 = vmatprep.subr.mxu0 0.0
    %2013 = vmatpush1.msra.mxu0 0.0
    %2014 = vmatprep.subr.mxu0 0.0
    %2015 = vmatpush1.msra.mxu0 0.0
    %2016 = vmatprep.subr.mxu0 0.0
    %2017 = vmatpush1.msra.mxu0 0.0
    %2018 = vmatprep.subr.mxu0 0.0
    %2019 = vmatpush1.msra.mxu0 0.0
    %2020 = vmatprep.subr.mxu0 0.0
    %2021 = vmatpush1.msra.mxu0 0.0
    %2022 = vmatprep.subr.mxu0 0.0
    %2023 = vmatpush1.msra.mxu0 0.0
    %2024 = vmatprep.subr.mxu0 0.0
    %2025 = vmatpush1.msra.mxu0 0.0
    %2026 = vmatprep.subr.mxu0 0.0
    %2027 = vmatpush1.msra.mxu0 0.0
    %2028 = vmatprep.subr.mxu0 %v1929
    %2029 = vmatpush1.msra.mxu0 %v1928
    %2030 = vmatprep.subr.mxu0 %v1927
    %2031 = vmatpush1.msra.mxu0 %v1926
    %2032 = vmatprep.subr.mxu0 %v1925
    %2033 = vmatpush1.msra.mxu0 %v1924
    %2034 = vmatprep.subr.mxu0 %v1923
    %2035 = vmatpush1.msra.mxu0 %v1922
    %2036 = vmatprep.subr.mxu0 %v1921
    %2037 = vmatpush1.msra.mxu0 %v1920
    %2038 = vmatprep.subr.mxu0 %v1919
    %2039 = vmatpush1.msra.mxu0 %v1918
    %2040 = vmatprep.subr.mxu0 %v1917
    %2041 = vmatpush1.msra.mxu0 %v1916
    %2042 = vmatprep.subr.mxu0 %v1915
    %2043 = vmatpush1.msra.mxu0 %v1914
    %2044 = vmatprep.subr.mxu0 0.0
    %2045 = vmatpush2.msra.mxu0 0.0
    %2046 = vmatprep.subr.mxu0 0.0
    %2047 = vmatpush2.msra.mxu0 0.0
    %2048 = vmatprep.subr.mxu0 0.0
    %2049 = vmatpush2.msra.mxu0 0.0
    %2050 = vmatprep.subr.mxu0 0.0
    %2051 = vmatpush2.msra.mxu0 0.0
    %2052 = vmatprep.subr.mxu0 0.0
    %2053 = vmatpush2.msra.mxu0 0.0
    %2054 = vmatprep.subr.mxu0 0.0
    %2055 = vmatpush2.msra.mxu0 0.0
    %2056 = vmatprep.subr.mxu0 0.0
    %2057 = vmatpush2.msra.mxu0 0.0
    %2058 = vmatprep.subr.mxu0 0.0
    %2059 = vmatpush2.msra.mxu0 0.0
    %2060 = vmatprep.subr.mxu0 0.0
    %2061 = vmatpush2.msra.mxu0 0.0
    %2062 = vmatprep.subr.mxu0 0.0
    %2063 = vmatpush2.msra.mxu0 0.0
    %2064 = vmatprep.subr.mxu0 0.0
    %2065 = vmatpush2.msra.mxu0 0.0
    %2066 = vmatprep.subr.mxu0 0.0
    %2067 = vmatpush2.msra.mxu0 0.0
    %2068 = vmatprep.subr.mxu0 0.0
    %2069 = vmatpush2.msra.mxu0 0.0
    %2070 = vmatprep.subr.mxu0 0.0
    %2071 = vmatpush2.msra.mxu0 0.0
    %2072 = vmatprep.subr.mxu0 0.0
    %2073 = vmatpush2.msra.mxu0 0.0
    %2074 = vmatprep.subr.mxu0 0.0
    %2075 = vmatpush2.msra.mxu0 0.0
    %2076 = vmatprep.mubr.f32.mxu0 0.0
    %2077 = vmatmul.mubr.f32.gmra.mxu0 %v1989
    %v2078 = vpop.f32.mrf.mxu0
    %v2079 = vadd.f32 %v1951, %v2078
    %v2080 = vpop.f32.mrf.mxu0
    %v2081 = vadd.f32 %v1951, %v2080
    %2082 = vmatprep.mubr.f32.mxu0 0.0
    %2083 = vmatmul.mubr.f32.gmra.mxu0 %v1992
    %v2084 = vpop.f32.mrf.mxu0
    %v2085 = vadd.f32 %v1956, %v2084
    %v2086 = vpop.f32.mrf.mxu0
    %v2087 = vadd.f32 %v1956, %v2086
    %2088 = vmatprep.mubr.f32.mxu0 0.0
    %2089 = vmatmul.mubr.f32.gmra.mxu0 %v1995
    %v2090 = vpop.f32.mrf.mxu0
    %v2091 = vadd.f32 %v1961, %v2090
    %v2092 = vpop.f32.mrf.mxu0
    %v2093 = vadd.f32 %v1961, %v2092
    %2094 = vmatprep.mubr.f32.mxu0 0.0
    %2095 = vmatmul.mubr.f32.gmra.mxu0 %v1998
    %v2096 = vpop.f32.mrf.mxu0
    %v2097 = vadd.f32 %v1966, %v2096
    %v2098 = vpop.f32.mrf.mxu0
    %v2099 = vadd.f32 %v1966, %v2098
    %2100 = vmatprep.mubr.f32.mxu0 0.0
    %2101 = vmatmul.mubr.f32.gmra.mxu0 %v2001
    %v2102 = vpop.f32.mrf.mxu0
    %v2103 = vadd.f32 %v1971, %v2102
    %v2104 = vpop.f32.mrf.mxu0
    %v2105 = vadd.f32 %v1971, %v2104
    %2106 = vmatprep.mubr.f32.mxu0 0.0
    %2107 = vmatmul.mubr.f32.gmra.mxu0 %v2004
    %v2108 = vpop.f32.mrf.mxu0
    %v2109 = vadd.f32 %v1976, %v2108
    %v2110 = vpop.f32.mrf.mxu0
    %v2111 = vadd.f32 %v1976, %v2110
    %2112 = vmatprep.mubr.f32.mxu0 0.0
    %2113 = vmatmul.mubr.f32.gmra.mxu0 %v2007
    %v2114 = vpop.f32.mrf.mxu0
    %v2115 = vadd.f32 %v1981, %v2114
    %v2116 = vpop.f32.mrf.mxu0
    %v2117 = vadd.f32 %v1981, %v2116
    %2118 = vmatprep.mubr.f32.mxu0 0.0
    %2119 = vmatmul.mubr.f32.gmra.mxu0 %v2010
    %v2120 = vpop.f32.mrf.mxu0
    %v2121 = vadd.f32 %v1986, %v2120
    %v2122 = vpop.f32.mrf.mxu0
    %v2123 = vadd.f32 %v1986, %v2122
    %2124 = vdwg.mxu0
    %v2125 = vmax.f32 %v2079, 0.0
    %v2126 = vmax.f32 %v2081, 0.0
    %v2127 = vmax.f32 %v2085, 0.0
    %v2128 = vmax.f32 %v2087, 0.0
    %v2129 = vmax.f32 %v2091, 0.0
    %v2130 = vmax.f32 %v2093, 0.0
    %v2131 = vmax.f32 %v2097, 0.0
    %v2132 = vmax.f32 %v2099, 0.0
    %v2133 = vmax.f32 %v2103, 0.0
    %v2134 = vmax.f32 %v2105, 0.0
    %v2135 = vmax.f32 %v2109, 0.0
    %v2136 = vmax.f32 %v2111, 0.0
    %v2137 = vmax.f32 %v2115, 0.0
    %v2138 = vmax.f32 %v2117, 0.0
    %v2139 = vmax.f32 %v2121, 0.0
    %v2140 = vmax.f32 %v2123, 0.0
    %s2141 = scalar_lea.vmem %s6, 48
    %v2142 = vld [vmem:[%s2141] sm:$0xff]
    %v2143 = vld [vmem:[%s2141 + $0x8] sm:$0xff]
    %s2144 = scalar_lea.vmem %s7, 48
    %v2145 = vld [vmem:[%s2144] sm:$0xff]
    %v2146 = vld [vmem:[%s2144 + $0x8] sm:$0xff]
    %2148 = vset.pattern.permute.xlu0 0
    %2149 = vperm.xlu0 %2148, %v2145
    %v2150 = vpop.permute.xlu0 %2149
    %2153 = vset.pattern.permute.xlu0 0
    %2154 = vperm.xlu0 %2153, %v2146
    %v2155 = vpop.permute.xlu0 %2154
    %v2158 = vsel %vm303, %v2142, 0
    %v2161 = vsel %vm303, %v2143, 0
    %2163 = vmatprep.subr.mxu0 0.0
    %2164 = vmatpush1.msra.mxu0 0.0
    %2165 = vmatprep.subr.mxu0 0.0
    %2166 = vmatpush1.msra.mxu0 0.0
    %2167 = vmatprep.subr.mxu0 0.0
    %2168 = vmatpush1.msra.mxu0 0.0
    %2169 = vmatprep.subr.mxu0 0.0
    %2170 = vmatpush1.msra.mxu0 0.0
    %2171 = vmatprep.subr.mxu0 0.0
    %2172 = vmatpush1.msra.mxu0 0.0
    %2173 = vmatprep.subr.mxu0 0.0
    %2174 = vmatpush1.msra.mxu0 0.0
    %2175 = vmatprep.subr.mxu0 0.0
    %2176 = vmatpush1.msra.mxu0 0.0
    %2177 = vmatprep.subr.mxu0 0.0
    %2178 = vmatpush1.msra.mxu0 0.0
    %2179 = vmatprep.subr.mxu0 %v2140
    %2180 = vmatpush1.msra.mxu0 %v2139
    %2181 = vmatprep.subr.mxu0 %v2138
    %2182 = vmatpush1.msra.mxu0 %v2137
    %2183 = vmatprep.subr.mxu0 %v2136
    %2184 = vmatpush1.msra.mxu0 %v2135
    %2185 = vmatprep.subr.mxu0 %v2134
    %2186 = vmatpush1.msra.mxu0 %v2133
    %2187 = vmatprep.subr.mxu0 %v2132
    %2188 = vmatpush1.msra.mxu0 %v2131
    %2189 = vmatprep.subr.mxu0 %v2130
    %2190 = vmatpush1.msra.mxu0 %v2129
    %2191 = vmatprep.subr.mxu0 %v2128
    %2192 = vmatpush1.msra.mxu0 %v2127
    %2193 = vmatprep.subr.mxu0 %v2126
    %2194 = vmatpush1.msra.mxu0 %v2125
    %2195 = vmatprep.subr.mxu0 0.0
    %2196 = vmatpush2.msra.mxu0 0.0
    %2197 = vmatprep.subr.mxu0 0.0
    %2198 = vmatpush2.msra.mxu0 0.0
    %2199 = vmatprep.subr.mxu0 0.0
    %2200 = vmatpush2.msra.mxu0 0.0
    %2201 = vmatprep.subr.mxu0 0.0
    %2202 = vmatpush2.msra.mxu0 0.0
    %2203 = vmatprep.subr.mxu0 0.0
    %2204 = vmatpush2.msra.mxu0 0.0
    %2205 = vmatprep.subr.mxu0 0.0
    %2206 = vmatpush2.msra.mxu0 0.0
    %2207 = vmatprep.subr.mxu0 0.0
    %2208 = vmatpush2.msra.mxu0 0.0
    %2209 = vmatprep.subr.mxu0 0.0
    %2210 = vmatpush2.msra.mxu0 0.0
    %2211 = vmatprep.subr.mxu0 0.0
    %2212 = vmatpush2.msra.mxu0 0.0
    %2213 = vmatprep.subr.mxu0 0.0
    %2214 = vmatpush2.msra.mxu0 0.0
    %2215 = vmatprep.subr.mxu0 0.0
    %2216 = vmatpush2.msra.mxu0 0.0
    %2217 = vmatprep.subr.mxu0 0.0
    %2218 = vmatpush2.msra.mxu0 0.0
    %2219 = vmatprep.subr.mxu0 0.0
    %2220 = vmatpush2.msra.mxu0 0.0
    %2221 = vmatprep.subr.mxu0 0.0
    %2222 = vmatpush2.msra.mxu0 0.0
    %2223 = vmatprep.subr.mxu0 0.0
    %2224 = vmatpush2.msra.mxu0 0.0
    %2225 = vmatprep.subr.mxu0 0.0
    %2226 = vmatpush2.msra.mxu0 0.0
    %2227 = vmatprep.mubr.f32.mxu0 0.0
    %2228 = vmatmul.mubr.f32.gmra.mxu0 %v2158
    %v2229 = vpop.f32.mrf.mxu0
    %v2230 = vadd.f32 %v2150, %v2229
    %v2231 = vpop.f32.mrf.mxu0
    %v2232 = vadd.f32 %v2150, %v2231
    %2233 = vmatprep.mubr.f32.mxu0 0.0
    %2234 = vmatmul.mubr.f32.gmra.mxu0 %v2161
    %v2235 = vpop.f32.mrf.mxu0
    %v2236 = vadd.f32 %v2155, %v2235
    %v2237 = vpop.f32.mrf.mxu0
    %v2238 = vadd.f32 %v2155, %v2237
    %2239 = vdwg.mxu0
    %v2240 = vtanh.pop %v2230
    %v2241 = vtanh.pop %v2232
    %v2242 = vmul.f32 %v2240, 1.442695
    %v2243 = vpow.pop %v2242
    %v2244 = vmul.f32 %v2241, 1.442695
    %v2245 = vpow.pop %v2244
    %2247 = vset.pattern.permute.xlu0 0
    %2248 = vperm.xlu0 %2247, %v1718
    %v2249 = vpop.permute.xlu0 %2248
    %v2251 = vmul.f32 %v2249, %v2243
    %v2252 = vmul.f32 %v2249, %v2245
    %2254 = vset.pattern.permute.xlu0 0
    %2255 = vperm.xlu0 %2254, %v1717
    %v2256 = vpop.permute.xlu0 %2255
    %v2258 = vadd.f32 %v2256, %v2251
    %v2259 = vadd.f32 %v2256, %v2252
    %v2260 = vmul.f32 %v1700, %v2258
    %v2261 = vmul.f32 %v1701, %v2259
    %v2262 = vadd.f32 %v2260, %v2236
    %v2263 = vadd.f32 %v2261, %v2238
    %v2264 = vrot.slane %v2240, 4
    %v2265 = vadd.f32 %v2240, %v2264
    %v2266 = vrot.slane %v2265, 2
    %v2267 = vadd.f32 %v2265, %v2266
    %v2268 = vrot.slane %v2267, 1
    %v2269 = vadd.f32 %v2267, %v2268
    %v2270 = vrot.slane %v2241, 4
    %v2271 = vadd.f32 %v2241, %v2270
    %v2272 = vrot.slane %v2271, 2
    %v2273 = vadd.f32 %v2271, %v2272
    %v2274 = vrot.slane %v2273, 1
    %v2275 = vadd.f32 %v2273, %v2274
    %v2276 = vadd.f32 %v1714, %v2269
    %v2277 = vadd.f32 %v1715, %v2275
    %v2280 = vcombine.low %v2262, %v2263
    %2282 = vst [vmem:[#allocation2] sm:$0xff] %v2280
    %v2285 = vcombine.low %v2276, %v2277
    %v2287 = vunpack.c.l.s4 1966171168
    %v2288 = vunpack.c.0.s8 %v2287
    %v2289 = vlaneseq
    %v2290 = vshrl.u32 %v2289, 7
    %v2291 = vsub.s32 %v2288, %v2290
    %v2292 = vrot.slane %v2285, %v2291
    %v2294 = vunpack.c.l.s4 1966171168
    %v2295 = vunpack.c.0.s8 %v2294
    %v2296 = vlaneseq
    %v2297 = vshrl.u32 %v2296, 7
    %v2298 = vsub.s32 %v2295, %v2297
    %v2299 = vrot.slane %v2292, %v2298
    %v2301 = vlaneseq
    %vm2302 = vcmp.ge.s32.totalorder %v2301, 0
    %vm2303 = vcmp.lt.s32.totalorder %v2301, 256
    %vm2304 = vmand %vm2302, %vm2303
    %2305 = vst.msk [vmem:[#allocation4] sm:$0x3] %vm2304, %v2299
    // Predicated region
    $region34: #{tpu_custom_call.1} parent=1 // pred_check
      _
    $region35: #{tpu_custom_call.1} parent=1 // pred_check_branch
      %2307 = sbr.rel (0) target = $region37
    $region36: #{tpu_custom_call.1} parent=1 // pred_region
      %s2309 = ssub.s32 128, 128
      %2310 = vsyncadd [#allocation3], %s2309
      %s2312 = sshll.u32 [#allocation2], 4
      %s2313 = int_to_ptr.vmem [resolvable:$true] %s2312
      %2315 = dma.vmem_to_hbm [thread:$0]  %s2313, 128, %s8, [#allocation3]
    $region37: #{tpu_custom_call.1} parent=1 // pred_fallthru
      _
    // Predicated region
    $region38: #{tpu_custom_call.1} parent=1 // pred_check
      _
    $region39: #{tpu_custom_call.1} parent=1 // pred_check_branch
      %2317 = sbr.rel (0) target = $region41
    $region40: #{tpu_custom_call.1} parent=1 // pred_region
      %s2319 = ssub.s32 32, 32
      %2320 = vsyncadd [#allocation5], %s2319
      %s2322 = sshll.u32 [#allocation4], 4
      %s2323 = int_to_ptr.vmem [resolvable:$true] %s2322
      %2325 = dma.vmem_to_hbm [thread:$0]  %s2323, 32, %s9, [#allocation5]
    $region41: #{tpu_custom_call.1} parent=1 // pred_fallthru
      _
    // Predicated region
    $region42: #{tpu_custom_call.1} parent=1 // pred_check
      _
    $region43: #{tpu_custom_call.1} parent=1 // pred_check_branch
      %2327 = sbr.rel (0) target = $region45
    $region44: #{tpu_custom_call.1} parent=1 // pred_region
      %2328 = dma.done [#allocation3], 128
    $region45: #{tpu_custom_call.1} parent=1 // pred_fallthru
      _
    // Predicated region
    $region46: #{tpu_custom_call.1} parent=1 // pred_check
      _
    $region47: #{tpu_custom_call.1} parent=1 // pred_check_branch
      %2330 = sbr.rel (0) target = $region49
    $region48: #{tpu_custom_call.1} parent=1 // pred_region
      %2331 = dma.done [#allocation5], 32
    $region49: #{tpu_custom_call.1} parent=1 // pred_fallthru
      _
    %2332 = vsyncpa [#allocation3], 1
    %2333 = vsyncpa [#allocation5], 1

</llo_original>
